<compile_context>
chip_gen: v6e
topology: v6e:2x2x1
jax: 0.10.0
libtpu: 0.0.40
codegen_flags: <defaults>
</compile_context>

<pallas_src>
import functools

import jax
import jax.numpy as jnp
from jax.experimental import pallas as pl
from jax.experimental.pallas import tpu as pltpu


# --------------------------------------------------------------------------- #
# Kernel
# --------------------------------------------------------------------------- #
def gating_kernel(scale_ref,          # SMEM: (1,) f32 logit_scale
                  x_ref,              # VMEM: (TILE_B, IN)  input dtype (cast in-kernel)
                  w0_ref, b0_ref,     # VMEM: (IN, H) bf16, (1, H) f32
                  w1_ref, b1_ref,     # VMEM: (H, H)  bf16, (1, H) f32
                  w2_ref, b2_ref,     # VMEM: (H, H)  bf16, (1, H) f32
                  w3_ref, b3_ref,     # VMEM: (H, O)  bf16, (1, O) f32  (1/T folded in)
                  o_ref):             # VMEM: (TILE_B, O) f32
    # In-kernel bf16 cast of the activations (VPU work hidden under the DMA).
    x = x_ref[...].astype(jnp.bfloat16)

    # Hoist bias reads once per grid step.
    b0 = b0_ref[...]
    b1 = b1_ref[...]
    b2 = b2_ref[...]
    b3 = b3_ref[...]

    # Three hidden Linear -> ReLU layers: bf16 MXU inputs, f32 accumulation.
    h = jnp.dot(x, w0_ref[...], preferred_element_type=jnp.float32) + b0
    h = jnp.maximum(h, 0.0).astype(jnp.bfloat16)
    h = jnp.dot(h, w1_ref[...], preferred_element_type=jnp.float32) + b1
    h = jnp.maximum(h, 0.0).astype(jnp.bfloat16)
    h = jnp.dot(h, w2_ref[...], preferred_element_type=jnp.float32) + b2
    h = jnp.maximum(h, 0.0).astype(jnp.bfloat16)

    # Final Linear (no ReLU); 1/temperature already folded into w3/b3.
    # Only the real `O` output columns exist -> no padded lanes anywhere below.
    z = jnp.dot(h, w3_ref[...], preferred_element_type=jnp.float32) + b3

    # Numerically stable softmax over the feature axis, fused with logit_scale.
    # Exact reciprocal so output rows sum to logit_scale within f32 rounding.
    m = jnp.max(z, axis=-1, keepdims=True)
    e = jnp.exp(z - m)
    s = jnp.sum(e, axis=-1, keepdims=True)
    o_ref[...] = e * (scale_ref[0] * pl.reciprocal(s))


# --------------------------------------------------------------------------- #
# One-time parameter preparation (hoisted out of the per-call forward)
# --------------------------------------------------------------------------- #
def prepare_params(params, temperature):
    """Fold 1/T into the last Linear and cast weights/biases once.

    params = (w0, b0, w1, b1, w2, b2, w3, b3, logit_scale), weights are [in, out].
    softmax((x @ W + b) / T) == softmax(x @ (W/T) + (b/T))   (exact).
    """
    w0, b0, w1, b1, w2, b2, w3, b3, scale = params
    inv_t = jnp.float32(1.0 / float(temperature))
    return (
        w0.astype(jnp.bfloat16), b0.astype(jnp.float32).reshape(1, -1),
        w1.astype(jnp.bfloat16), b1.astype(jnp.float32).reshape(1, -1),
        w2.astype(jnp.bfloat16), b2.astype(jnp.float32).reshape(1, -1),
        (w3.astype(jnp.float32) * inv_t).astype(jnp.bfloat16),
        (b3.astype(jnp.float32) * inv_t).reshape(1, -1),
        scale.astype(jnp.float32).reshape(1,),
    )


# --------------------------------------------------------------------------- #
# Batch-tile selection
# --------------------------------------------------------------------------- #
def _round_up(x, m):
    return ((x + m - 1) // m) * m


def _num_local_tensorcores():
    # v7x exposes 2 TensorCores per chip; v5e/v6e have 1.  Best-effort detection.
    try:
        kind = jax.devices()[0].device_kind.lower()
    except Exception:
        return 1
    return 2 if "v7" in kind else 1


def _choose_tile_b(batch, tile_b=None, max_tile=2048):
    b8 = _round_up(max(batch, 1), 8)
    if tile_b is not None:
        return max(8, min(_round_up(tile_b, 8), b8))
    n_tc = _num_local_tensorcores()
    if n_tc > 1:
        # >= n_tc balanced blocks so the "parallel" grid shards across TCs (v7x).
        tile = _round_up(-(-b8 // n_tc), 8)
    else:
        # Single TensorCore (v5e/v6e): one big block removes per-step overhead.
        tile = b8
    return min(tile, max_tile)


# --------------------------------------------------------------------------- #
# Forward wrapper
# --------------------------------------------------------------------------- #
def gating_forward(x, prepared, *, tile_b=None, max_tile=2048):
    """prepared = output of prepare_params(); x is (B, in_features)."""
    w0, b0, w1, b1, w2, b2, w3, b3, scale = prepared
    B, IN = x.shape
    H = w0.shape[1]
    O = w3.shape[1]

    tb = _choose_tile_b(B, tile_b, max_tile)
    grid_b = pl.cdiv(B, tb)
    Bp = grid_b * tb
    x_in = x if Bp == B else jnp.pad(x, ((0, Bp - B), (0, 0)))

    def resident(shape):
        # Same block index at every grid step -> DMA'd once, stays VMEM-resident.
        return pl.BlockSpec(shape, lambda i: (0, 0))

    out = pl.pallas_call(
        gating_kernel,
        out_shape=jax.ShapeDtypeStruct((Bp, O), jnp.float32),
        grid=(grid_b,),
        in_specs=[
            pl.BlockSpec(memory_space=pltpu.MemorySpace.SMEM),   # logit_scale
            pl.BlockSpec((tb, IN), lambda i: (i, 0)),            # x (batch-tiled)
            resident((IN, H)), resident((1, H)),                 # w0, b0
            resident((H, H)), resident((1, H)),                  # w1, b1
            resident((H, H)), resident((1, H)),                  # w2, b2
            resident((H, O)), resident((1, O)),                  # w3, b3 (1/T folded)
        ],
        out_specs=pl.BlockSpec((tb, O), lambda i: (i, 0)),
        compiler_params=pltpu.CompilerParams(
            dimension_semantics=("parallel",)),
    )(scale, x_in, w0, b0, w1, b1, w2, b2, w3, b3)

    return out[:B] if Bp != B else out


# --------------------------------------------------------------------------- #
# Parameter init + pure-JAX reference
# --------------------------------------------------------------------------- #
def init_params(key, in_features, hidden_dim, out_features, logit_scale=1.0):
    ks = jax.random.split(key, 8)

    def lin(kw, kb, fan_in, fan_out):
        w = jax.random.normal(kw, (fan_in, fan_out), jnp.float32) * 0.05
        b = jax.random.normal(kb, (1, fan_out), jnp.float32) * 0.05
        return w, b

    w0, b0 = lin(ks[0], ks[1], in_features, hidden_dim)
    w1, b1 = lin(ks[2], ks[3], hidden_dim, hidden_dim)
    w2, b2 = lin(ks[4], ks[5], hidden_dim, hidden_dim)
    w3, b3 = lin(ks[6], ks[7], hidden_dim, out_features)
    scale = jnp.ones((1,), jnp.float32) * logit_scale
    return (w0, b0, w1, b1, w2, b2, w3, b3, scale)


def reference_forward(x, params, temperature):
    w0, b0, w1, b1, w2, b2, w3, b3, scale = params
    dot = functools.partial(jnp.dot, precision=jax.lax.Precision.HIGHEST)
    h = jnp.maximum(dot(x, w0) + b0, 0.0)
    h = jnp.maximum(dot(h, w1) + b1, 0.0)
    h = jnp.maximum(dot(h, w2) + b2, 0.0)
    logits = dot(h, w3) + b3
    return jax.nn.softmax(logits / temperature, axis=1) * scale[0]


# --------------------------------------------------------------------------- #
# Demo / self-test
# --------------------------------------------------------------------------- #
if __name__ == "__main__":
    # Small shapes consistent with the module (n_hidden=3); batch large enough
    # to exercise the MXU / batch tiling: B=256, IN=32, H=128, OUT=8.
    B, IN, H, OUT = 256, 32, 128, 8
    TEMPERATURE = 10.0
    LOGIT_SCALE = 1.0

    key = jax.random.PRNGKey(0)
    kx, kp = jax.random.split(key)
    x = jax.random.normal(kx, (B, IN), jnp.float32)
    params = init_params(kp, IN, H, OUT, LOGIT_SCALE)

    # One-time weight prep (folds 1/T, casts to bf16/f32) -- not per forward call.
    prepared = prepare_params(params, TEMPERATURE)
    prepared = jax.block_until_ready(prepared)

    out = gating_forward(x, prepared)
    out = jax.block_until_ready(out)

    ref = reference_forward(x, params, TEMPERATURE)
    assert out.shape == (B, OUT), f"bad output shape {out.shape}"
    max_err = float(jnp.max(jnp.abs(out - ref)))
    # bf16 matmul inputs -> loosen tolerance vs f32 reference.
    assert jnp.allclose(out, ref, atol=3e-3, rtol=3e-2), \
        f"mismatch vs reference (max abs err {max_err})"
    # softmax rows (times logit_scale) must sum to logit_scale (exact reciprocal).
    row_sums = jnp.sum(out, axis=1)
    assert jnp.allclose(row_sums, jnp.full((B,), LOGIT_SCALE), atol=1e-4), \
        "row sums deviate from logit_scale"
    print("KERNEL_OK")
</pallas_src>

<mosaic_0001>
module attributes {stable_mosaic.version = 11 : i64} {
  func.func @gating_kernel(%arg0: i32, %arg1: memref<1xf32, #tpu.memory_space<smem>>, %arg2: memref<256x32xf32, #tpu.memory_space<vmem>>, %arg3: memref<32x128xbf16, #tpu.memory_space<vmem>>, %arg4: memref<1x128xf32, #tpu.memory_space<vmem>>, %arg5: memref<128x128xbf16, #tpu.memory_space<vmem>>, %arg6: memref<1x128xf32, #tpu.memory_space<vmem>>, %arg7: memref<128x128xbf16, #tpu.memory_space<vmem>>, %arg8: memref<1x128xf32, #tpu.memory_space<vmem>>, %arg9: memref<128x8xbf16, #tpu.memory_space<vmem>>, %arg10: memref<1x8xf32, #tpu.memory_space<vmem>>, %arg11: memref<256x8xf32, #tpu.memory_space<vmem>>) attributes {dimension_semantics = [#tpu.dimension_semantics<parallel>], iteration_bounds = array<i64: 1>, scalar_prefetch = 0 : i64, scratch_operands = 0 : i64, tpu.core_type = #tpu.core_type<tc>, window_params = [{transform_indices = @transform_0, window_bounds = array<i64: 1>}, {transform_indices = @transform_1, window_bounds = array<i64: 256, 32>}, {pipeline_mode = #tpu.pipeline_mode<synchronous>, transform_indices = @transform_2, window_bounds = array<i64: 32, 128>}, {pipeline_mode = #tpu.pipeline_mode<synchronous>, transform_indices = @transform_3, window_bounds = array<i64: 1, 128>}, {pipeline_mode = #tpu.pipeline_mode<synchronous>, transform_indices = @transform_4, window_bounds = array<i64: 128, 128>}, {pipeline_mode = #tpu.pipeline_mode<synchronous>, transform_indices = @transform_5, window_bounds = array<i64: 1, 128>}, {pipeline_mode = #tpu.pipeline_mode<synchronous>, transform_indices = @transform_6, window_bounds = array<i64: 128, 128>}, {pipeline_mode = #tpu.pipeline_mode<synchronous>, transform_indices = @transform_7, window_bounds = array<i64: 1, 128>}, {pipeline_mode = #tpu.pipeline_mode<synchronous>, transform_indices = @transform_8, window_bounds = array<i64: 128, 8>}, {pipeline_mode = #tpu.pipeline_mode<synchronous>, transform_indices = @transform_9, window_bounds = array<i64: 1, 8>}, {transform_indices = @transform_10, window_bounds = array<i64: 256, 8>}]} {
    %c0 = arith.constant 0 : index
    %c0_0 = arith.constant 0 : index
    %0 = vector.load %arg2[%c0, %c0_0] : memref<256x32xf32, #tpu.memory_space<vmem>>, vector<256x32xf32>
    %1 = arith.truncf %0 : vector<256x32xf32> to vector<256x32xbf16>
    %c0_1 = arith.constant 0 : index
    %c0_2 = arith.constant 0 : index
    %2 = vector.load %arg4[%c0_1, %c0_2] : memref<1x128xf32, #tpu.memory_space<vmem>>, vector<1x128xf32>
    %c0_3 = arith.constant 0 : index
    %c0_4 = arith.constant 0 : index
    %3 = vector.load %arg6[%c0_3, %c0_4] : memref<1x128xf32, #tpu.memory_space<vmem>>, vector<1x128xf32>
    %c0_5 = arith.constant 0 : index
    %c0_6 = arith.constant 0 : index
    %4 = vector.load %arg8[%c0_5, %c0_6] : memref<1x128xf32, #tpu.memory_space<vmem>>, vector<1x128xf32>
    %c0_7 = arith.constant 0 : index
    %c0_8 = arith.constant 0 : index
    %5 = vector.load %arg10[%c0_7, %c0_8] : memref<1x8xf32, #tpu.memory_space<vmem>>, vector<1x8xf32>
    %c0_9 = arith.constant 0 : index
    %c0_10 = arith.constant 0 : index
    %6 = vector.load %arg3[%c0_9, %c0_10] : memref<32x128xbf16, #tpu.memory_space<vmem>>, vector<32x128xbf16>
    %cst = arith.constant dense<0.000000e+00> : vector<256x128xf32>
    %7 = tpu.matmul %1, %6, %cst {dimension_numbers = #tpu.dot_dimension_numbers<[1], [0], [0], [1], [0, 0, 1, 1], [], []>} : vector<256x32xbf16>, vector<32x128xbf16>, vector<256x128xf32> -> vector<256x128xf32>
    %8 = vector.broadcast %2 : vector<1x128xf32> to vector<256x128xf32>
    %9 = arith.addf %7, %8 : vector<256x128xf32>
    %cst_11 = arith.constant 0.000000e+00 : f32
    %10 = vector.broadcast %cst_11 : f32 to vector<256x128xf32>
    %11 = arith.maximumf %9, %10 : vector<256x128xf32>
    %12 = arith.truncf %11 : vector<256x128xf32> to vector<256x128xbf16>
    %c0_12 = arith.constant 0 : index
    %c0_13 = arith.constant 0 : index
    %13 = vector.load %arg5[%c0_12, %c0_13] : memref<128x128xbf16, #tpu.memory_space<vmem>>, vector<128x128xbf16>
    %cst_14 = arith.constant dense<0.000000e+00> : vector<256x128xf32>
    %14 = tpu.matmul %12, %13, %cst_14 {dimension_numbers = #tpu.dot_dimension_numbers<[1], [0], [0], [1], [0, 0, 1, 1], [], []>} : vector<256x128xbf16>, vector<128x128xbf16>, vector<256x128xf32> -> vector<256x128xf32>
    %15 = vector.broadcast %3 : vector<1x128xf32> to vector<256x128xf32>
    %16 = arith.addf %14, %15 : vector<256x128xf32>
    %cst_15 = arith.constant 0.000000e+00 : f32
    %17 = vector.broadcast %cst_15 : f32 to vector<256x128xf32>
    %18 = arith.maximumf %16, %17 : vector<256x128xf32>
    %19 = arith.truncf %18 : vector<256x128xf32> to vector<256x128xbf16>
    %c0_16 = arith.constant 0 : index
    %c0_17 = arith.constant 0 : index
    %20 = vector.load %arg7[%c0_16, %c0_17] : memref<128x128xbf16, #tpu.memory_space<vmem>>, vector<128x128xbf16>
    %cst_18 = arith.constant dense<0.000000e+00> : vector<256x128xf32>
    %21 = tpu.matmul %19, %20, %cst_18 {dimension_numbers = #tpu.dot_dimension_numbers<[1], [0], [0], [1], [0, 0, 1, 1], [], []>} : vector<256x128xbf16>, vector<128x128xbf16>, vector<256x128xf32> -> vector<256x128xf32>
    %22 = vector.broadcast %4 : vector<1x128xf32> to vector<256x128xf32>
    %23 = arith.addf %21, %22 : vector<256x128xf32>
    %cst_19 = arith.constant 0.000000e+00 : f32
    %24 = vector.broadcast %cst_19 : f32 to vector<256x128xf32>
    %25 = arith.maximumf %23, %24 : vector<256x128xf32>
    %26 = arith.truncf %25 : vector<256x128xf32> to vector<256x128xbf16>
    %c0_20 = arith.constant 0 : index
    %c0_21 = arith.constant 0 : index
    %27 = vector.load %arg9[%c0_20, %c0_21] : memref<128x8xbf16, #tpu.memory_space<vmem>>, vector<128x8xbf16>
    %cst_22 = arith.constant dense<0.000000e+00> : vector<256x8xf32>
    %28 = tpu.matmul %26, %27, %cst_22 {dimension_numbers = #tpu.dot_dimension_numbers<[1], [0], [0], [1], [0, 0, 1, 1], [], []>} : vector<256x128xbf16>, vector<128x8xbf16>, vector<256x8xf32> -> vector<256x8xf32>
    %29 = vector.broadcast %5 : vector<1x8xf32> to vector<256x8xf32>
    %30 = arith.addf %28, %29 : vector<256x8xf32>
    %cst_23 = arith.constant dense<0xFF800000> : vector<256xf32>
    %31 = vector.multi_reduction <maximumf>, %30, %cst_23 [1] : vector<256x8xf32> to vector<256xf32>
    %32 = vector.shape_cast %31 : vector<256xf32> to vector<256x1xf32>
    %33 = vector.broadcast %32 : vector<256x1xf32> to vector<256x8xf32>
    %34 = arith.subf %30, %33 : vector<256x8xf32>
    %35 = math.exp %34 : vector<256x8xf32>
    %cst_24 = arith.constant dense<0.000000e+00> : vector<256xf32>
    %36 = vector.multi_reduction <add>, %35, %cst_24 [1] : vector<256x8xf32> to vector<256xf32>
    %37 = vector.shape_cast %36 : vector<256xf32> to vector<256x1xf32>
    %c0_25 = arith.constant 0 : index
    %38 = memref.load %arg1[%c0_25] : memref<1xf32, #tpu.memory_space<smem>>
    %39 = tpu.reciprocal %37 : vector<256x1xf32> -> vector<256x1xf32>
    %40 = vector.broadcast %38 : f32 to vector<256x1xf32>
    %41 = arith.mulf %40, %39 : vector<256x1xf32>
    %42 = vector.broadcast %41 : vector<256x1xf32> to vector<256x8xf32>
    %43 = arith.mulf %35, %42 : vector<256x8xf32>
    %c0_26 = arith.constant 0 : index
    %c0_27 = arith.constant 0 : index
    %44 = vector.load %arg11[%c0_26, %c0_27] : memref<256x8xf32, #tpu.memory_space<vmem>>, vector<256x8xf32>
    tpu.vector_store %arg11[%c0_26, %c0_27], %43 {strides = array<i32>} : memref<256x8xf32, #tpu.memory_space<vmem>>, vector<256x8xf32>,
    return
  }
  func.func @transform_0(%arg0: i32) -> i32 {
    %c0_i32 = arith.constant 0 : i32
    %c0_i32_0 = arith.constant 0 : i32
    return %c0_i32 : i32
  }
  func.func @transform_1(%arg0: i32) -> (i32, i32) {
    %c0_i32 = arith.constant 0 : i32
    %c0_i32_0 = arith.constant 0 : i32
    return %arg0, %c0_i32 : i32, i32
  }
  func.func @transform_2(%arg0: i32) -> (i32, i32) {
    %c0_i32 = arith.constant 0 : i32
    %c0_i32_0 = arith.constant 0 : i32
    %c0_i32_1 = arith.constant 0 : i32
    return %c0_i32, %c0_i32_0 : i32, i32
  }
  func.func @transform_3(%arg0: i32) -> (i32, i32) {
    %c0_i32 = arith.constant 0 : i32
    %c0_i32_0 = arith.constant 0 : i32
    %c0_i32_1 = arith.constant 0 : i32
    return %c0_i32, %c0_i32_0 : i32, i32
  }
  func.func @transform_4(%arg0: i32) -> (i32, i32) {
    %c0_i32 = arith.constant 0 : i32
    %c0_i32_0 = arith.constant 0 : i32
    %c0_i32_1 = arith.constant 0 : i32
    return %c0_i32, %c0_i32_0 : i32, i32
  }
  func.func @transform_5(%arg0: i32) -> (i32, i32) {
    %c0_i32 = arith.constant 0 : i32
    %c0_i32_0 = arith.constant 0 : i32
    %c0_i32_1 = arith.constant 0 : i32
    return %c0_i32, %c0_i32_0 : i32, i32
  }
  func.func @transform_6(%arg0: i32) -> (i32, i32) {
    %c0_i32 = arith.constant 0 : i32
    %c0_i32_0 = arith.constant 0 : i32
    %c0_i32_1 = arith.constant 0 : i32
    return %c0_i32, %c0_i32_0 : i32, i32
  }
  func.func @transform_7(%arg0: i32) -> (i32, i32) {
    %c0_i32 = arith.constant 0 : i32
    %c0_i32_0 = arith.constant 0 : i32
    %c0_i32_1 = arith.constant 0 : i32
    return %c0_i32, %c0_i32_0 : i32, i32
  }
  func.func @transform_8(%arg0: i32) -> (i32, i32) {
    %c0_i32 = arith.constant 0 : i32
    %c0_i32_0 = arith.constant 0 : i32
    %c0_i32_1 = arith.constant 0 : i32
    return %c0_i32, %c0_i32_0 : i32, i32
  }
  func.func @transform_9(%arg0: i32) -> (i32, i32) {
    %c0_i32 = arith.constant 0 : i32
    %c0_i32_0 = arith.constant 0 : i32
    %c0_i32_1 = arith.constant 0 : i32
    return %c0_i32, %c0_i32_0 : i32, i32
  }
  func.func @transform_10(%arg0: i32) -> (i32, i32) {
    %c0_i32 = arith.constant 0 : i32
    %c0_i32_0 = arith.constant 0 : i32
    return %arg0, %c0_i32 : i32, i32
  }
}

</mosaic_0001>

<llo_original>
// kernel: tpu_custom_call.1
$region0: #{tpu_custom_call.1}
  #allocation0 [shape = 'u32[]', space=smem, size = 0x4, offset = 0x4, fixed_abs, tag = 'smem constant byte address 0x4 - core index']
  #allocation1 [shape = 'u32[144,128]{1,0:T(1,128)}', space=vmem, size = 0x12000, scoped, tag = 'internal scratch']
  #allocation2 [shape = 'f32[1]{0:T(128)S(6)}', space=smem, size = 0x200, scoped, tag = 'scoped memory for tpu_custom_call.1']
  %s0 = inlined_call_operand.<no memory space> [shape: f32[1], index: 0, kind: input, shape index: {}]
  %s1 = inlined_call_operand.vmem [shape: f32[256,32], index: 1, kind: input, shape index: {}]
  %s2 = inlined_call_operand.vmem [shape: bf16[32,128], index: 2, kind: input, shape index: {}]
  %s3 = inlined_call_operand.vmem [shape: f32[1,128], index: 3, kind: input, shape index: {}]
  %s4 = inlined_call_operand.vmem [shape: bf16[128,128], index: 4, kind: input, shape index: {}]
  %s5 = inlined_call_operand.vmem [shape: f32[1,128], index: 5, kind: input, shape index: {}]
  %s6 = inlined_call_operand.vmem [shape: bf16[128,128], index: 6, kind: input, shape index: {}]
  %s7 = inlined_call_operand.vmem [shape: f32[1,128], index: 7, kind: input, shape index: {}]
  %s8 = inlined_call_operand.vmem [shape: bf16[128,8], index: 8, kind: input, shape index: {}]
  %s9 = inlined_call_operand.vmem [shape: f32[1,8], index: 9, kind: input, shape index: {}]
  %s10 = inlined_call_operand.vmem [shape: f32[256,8], index: 10, kind: output, shape index: {}]
  %s11 = sld [smem:[#allocation0]]
  $region50: #{tpu_custom_call.1} parent=0
    _
  %s13 = ssub.s32 1, %s11
  %s14 = scalar_select 0, %s13, %s11
  %15 = sst [smem:[#allocation2]] %s0
  // Predicated region
  $region2: #{tpu_custom_call.1} parent=0 // pred_check
    _
  $region3: #{tpu_custom_call.1} parent=0 // pred_check_branch
    %17 = sbr.rel (0) target = $region5
  $region4: #{tpu_custom_call.1} parent=0 // pred_region
    _
  $region5: #{tpu_custom_call.1} parent=0 // pred_fallthru
    _
  // Predicated region
  $region6: #{tpu_custom_call.1} parent=0 // pred_check
    _
  $region7: #{tpu_custom_call.1} parent=0 // pred_check_branch
    %19 = sbr.rel (0) target = $region9
  $region8: #{tpu_custom_call.1} parent=0 // pred_region
    _
  $region9: #{tpu_custom_call.1} parent=0 // pred_fallthru
    _
  // Predicated region
  $region10: #{tpu_custom_call.1} parent=0 // pred_check
    _
  $region11: #{tpu_custom_call.1} parent=0 // pred_check_branch
    %21 = sbr.rel (0) target = $region13
  $region12: #{tpu_custom_call.1} parent=0 // pred_region
    _
  $region13: #{tpu_custom_call.1} parent=0 // pred_fallthru
    _
  // Predicated region
  $region14: #{tpu_custom_call.1} parent=0 // pred_check
    _
  $region15: #{tpu_custom_call.1} parent=0 // pred_check_branch
    %23 = sbr.rel (0) target = $region17
  $region16: #{tpu_custom_call.1} parent=0 // pred_region
    _
  $region17: #{tpu_custom_call.1} parent=0 // pred_fallthru
    _
  // Predicated region
  $region18: #{tpu_custom_call.1} parent=0 // pred_check
    _
  $region19: #{tpu_custom_call.1} parent=0 // pred_check_branch
    %25 = sbr.rel (0) target = $region21
  $region20: #{tpu_custom_call.1} parent=0 // pred_region
    _
  $region21: #{tpu_custom_call.1} parent=0 // pred_fallthru
    _
  // Predicated region
  $region22: #{tpu_custom_call.1} parent=0 // pred_check
    _
  $region23: #{tpu_custom_call.1} parent=0 // pred_check_branch
    %27 = sbr.rel (0) target = $region25
  $region24: #{tpu_custom_call.1} parent=0 // pred_region
    _
  $region25: #{tpu_custom_call.1} parent=0 // pred_fallthru
    _
  // Predicated region
  $region26: #{tpu_custom_call.1} parent=0 // pred_check
    _
  $region27: #{tpu_custom_call.1} parent=0 // pred_check_branch
    %29 = sbr.rel (0) target = $region29
  $region28: #{tpu_custom_call.1} parent=0 // pred_region
    _
  $region29: #{tpu_custom_call.1} parent=0 // pred_fallthru
    _
  // Predicated region
  $region30: #{tpu_custom_call.1} parent=0 // pred_check
    _
  $region31: #{tpu_custom_call.1} parent=0 // pred_check_branch
    %31 = sbr.rel (0) target = $region33
  $region32: #{tpu_custom_call.1} parent=0 // pred_region
    _
  $region33: #{tpu_custom_call.1} parent=0 // pred_fallthru
    _
  // Predicated region
  $region34: #{tpu_custom_call.1} parent=0 // pred_check
    _
  $region35: #{tpu_custom_call.1} parent=0 // pred_check_branch
    %33 = sbr.rel (0) target = $region37
  $region36: #{tpu_custom_call.1} parent=0 // pred_region
    _
  $region37: #{tpu_custom_call.1} parent=0 // pred_fallthru
    _
  // Predicated region
  $region38: #{tpu_custom_call.1} parent=0 // pred_check
    _
  $region39: #{tpu_custom_call.1} parent=0 // pred_check_branch
    %35 = sbr.rel (0) target = $region41
  $region40: #{tpu_custom_call.1} parent=0 // pred_region
    _
  $region41: #{tpu_custom_call.1} parent=0 // pred_fallthru
    _
  %v37 = vld [vmem:[%s1] sm:$0xff]
  %v38 = vld [vmem:[%s1 + $0x8] sm:$0xff]
  %v39 = vld [vmem:[%s1 + $0x10] sm:$0xff]
  %v40 = vld [vmem:[%s1 + $0x18] sm:$0xff]
  %v41 = vld [vmem:[%s1 + $0x20] sm:$0xff]
  %v42 = vld [vmem:[%s1 + $0x28] sm:$0xff]
  %v43 = vld [vmem:[%s1 + $0x30] sm:$0xff]
  %v44 = vld [vmem:[%s1 + $0x38] sm:$0xff]
  %v45 = vld [vmem:[%s1 + $0x40] sm:$0xff]
  %v46 = vld [vmem:[%s1 + $0x48] sm:$0xff]
  %v47 = vld [vmem:[%s1 + $0x50] sm:$0xff]
  %v48 = vld [vmem:[%s1 + $0x58] sm:$0xff]
  %v49 = vld [vmem:[%s1 + $0x60] sm:$0xff]
  %v50 = vld [vmem:[%s1 + $0x68] sm:$0xff]
  %v51 = vld [vmem:[%s1 + $0x70] sm:$0xff]
  %v52 = vld [vmem:[%s1 + $0x78] sm:$0xff]
  %v53 = vld [vmem:[%s1 + $0x80] sm:$0xff]
  %v54 = vld [vmem:[%s1 + $0x88] sm:$0xff]
  %v55 = vld [vmem:[%s1 + $0x90] sm:$0xff]
  %v56 = vld [vmem:[%s1 + $0x98] sm:$0xff]
  %v57 = vld [vmem:[%s1 + $0xa0] sm:$0xff]
  %v58 = vld [vmem:[%s1 + $0xa8] sm:$0xff]
  %v59 = vld [vmem:[%s1 + $0xb0] sm:$0xff]
  %v60 = vld [vmem:[%s1 + $0xb8] sm:$0xff]
  %v61 = vld [vmem:[%s1 + $0xc0] sm:$0xff]
  %v62 = vld [vmem:[%s1 + $0xc8] sm:$0xff]
  %v63 = vld [vmem:[%s1 + $0xd0] sm:$0xff]
  %v64 = vld [vmem:[%s1 + $0xd8] sm:$0xff]
  %v65 = vld [vmem:[%s1 + $0xe0] sm:$0xff]
  %v66 = vld [vmem:[%s1 + $0xe8] sm:$0xff]
  %v67 = vld [vmem:[%s1 + $0xf0] sm:$0xff]
  %v68 = vld [vmem:[%s1 + $0xf8] sm:$0xff]
  %v69 = vpack.c.bf16 %v38, %v37
  %v70 = vpack.c.bf16 %v40, %v39
  %v71 = vpack.c.bf16 %v42, %v41
  %v72 = vpack.c.bf16 %v44, %v43
  %v73 = vpack.c.bf16 %v46, %v45
  %v74 = vpack.c.bf16 %v48, %v47
  %v75 = vpack.c.bf16 %v50, %v49
  %v76 = vpack.c.bf16 %v52, %v51
  %v77 = vpack.c.bf16 %v54, %v53
  %v78 = vpack.c.bf16 %v56, %v55
  %v79 = vpack.c.bf16 %v58, %v57
  %v80 = vpack.c.bf16 %v60, %v59
  %v81 = vpack.c.bf16 %v62, %v61
  %v82 = vpack.c.bf16 %v64, %v63
  %v83 = vpack.c.bf16 %v66, %v65
  %v84 = vpack.c.bf16 %v68, %v67
  %v85 = vld [vmem:[%s3] sm:$0x1]
  %v86 = vld [vmem:[%s5] sm:$0x1]
  %v87 = vld [vmem:[%s7] sm:$0x1]
  %v88 = vld [vmem:[%s9] sm:$0x1]
  %v89 = vld [vmem:[%s2] sm:$0xf]
  %v90 = vld [vmem:[%s2 + $0x4] sm:$0xf]
  %v91 = vld [vmem:[%s2 + $0x8] sm:$0xf]
  %v92 = vld [vmem:[%s2 + $0xc] sm:$0xf]
  %v94 = vlaneseq
  %v95 = vshrl.u32 %v94, 7
  %v96 = vsub.s32 0, %v95
  %v97 = vrot.slane %v85, %v96
  %v103 = vunpack.c.l.b16 %v89
  %v104 = vunpack.c.l.b16 %v90
  %v105 = vunpack.c.l.b16 %v91
  %v106 = vunpack.c.l.b16 %v92
  %v107 = vpack.c.b16 %v104, %v103
  %v108 = vpack.c.b16 %v106, %v105
  %vm111 = vcmask 261120
  %v113 = vsel %vm111, %v69, 0
  %v116 = vsel %vm111, %v70, 0
  %v119 = vsel %vm111, %v71, 0
  %v122 = vsel %vm111, %v72, 0
  %v125 = vsel %vm111, %v73, 0
  %v128 = vsel %vm111, %v74, 0
  %v131 = vsel %vm111, %v75, 0
  %v134 = vsel %vm111, %v76, 0
  %v137 = vsel %vm111, %v77, 0
  %v140 = vsel %vm111, %v78, 0
  %v143 = vsel %vm111, %v79, 0
  %v146 = vsel %vm111, %v80, 0
  %v149 = vsel %vm111, %v81, 0
  %v152 = vsel %vm111, %v82, 0
  %v155 = vsel %vm111, %v83, 0
  %v158 = vsel %vm111, %v84, 0
  %160 = vmatprep.subr.bf16.mxu0 0
  %161 = vmatpush1.bf16.msra.mxu0 0
  %162 = vmatprep.subr.bf16.mxu0 0
  %163 = vmatpush1.bf16.msra.mxu0 0
  %164 = vmatprep.subr.bf16.mxu0 0
  %165 = vmatpush1.bf16.msra.mxu0 0
  %166 = vmatprep.subr.bf16.mxu0 0
  %167 = vmatpush1.bf16.msra.mxu0 0
  %168 = vmatprep.subr.bf16.mxu0 0
  %169 = vmatpush1.bf16.msra.mxu0 0
  %170 = vmatprep.subr.bf16.mxu0 0
  %171 = vmatpush1.bf16.msra.mxu0 0
  %172 = vmatprep.subr.bf16.mxu0 0
  %173 = vmatpush1.bf16.msra.mxu0 %v108
  %174 = vmatprep.subr.bf16.mxu0 0
  %175 = vmatpush1.bf16.msra.mxu0 %v107
  %176 = vmatprep.subr.bf16.mxu0 0
  %177 = vmatpush2.bf16.msra.mxu0 0
  %178 = vmatprep.subr.bf16.mxu0 0
  %179 = vmatpush2.bf16.msra.mxu0 0
  %180 = vmatprep.subr.bf16.mxu0 0
  %181 = vmatpush2.bf16.msra.mxu0 0
  %182 = vmatprep.subr.bf16.mxu0 0
  %183 = vmatpush2.bf16.msra.mxu0 0
  %184 = vmatprep.subr.bf16.mxu0 0
  %185 = vmatpush2.bf16.msra.mxu0 0
  %186 = vmatprep.subr.bf16.mxu0 0
  %187 = vmatpush2.bf16.msra.mxu0 0
  %188 = vmatprep.subr.bf16.mxu0 0
  %189 = vmatpush2.bf16.msra.mxu0 0
  %190 = vmatprep.subr.bf16.mxu0 0
  %191 = vmatpush2.bf16.msra.mxu0 0
  %192 = vmatprep.mubr.bf16.mxu0 0
  %193 = vmatmul.mubr.bf16.gmra.mxu0 %v113
  %v194 = vpop.f32.mrf.mxu0
  %v195 = vadd.f32 %v97, %v194
  %v196 = vpop.f32.mrf.mxu0
  %v197 = vpop.f32.mrf.mxu0
  %v198 = vadd.f32 %v97, %v197
  %v199 = vpop.f32.mrf.mxu0
  %200 = vmatprep.mubr.bf16.mxu0 0
  %201 = vmatmul.mubr.bf16.gmra.mxu0 %v116
  %v202 = vpop.f32.mrf.mxu0
  %v203 = vadd.f32 %v97, %v202
  %v204 = vpop.f32.mrf.mxu0
  %v205 = vpop.f32.mrf.mxu0
  %v206 = vadd.f32 %v97, %v205
  %v207 = vpop.f32.mrf.mxu0
  %208 = vmatprep.mubr.bf16.mxu0 0
  %209 = vmatmul.mubr.bf16.gmra.mxu0 %v119
  %v210 = vpop.f32.mrf.mxu0
  %v211 = vadd.f32 %v97, %v210
  %v212 = vpop.f32.mrf.mxu0
  %v213 = vpop.f32.mrf.mxu0
  %v214 = vadd.f32 %v97, %v213
  %v215 = vpop.f32.mrf.mxu0
  %216 = vmatprep.mubr.bf16.mxu0 0
  %217 = vmatmul.mubr.bf16.gmra.mxu0 %v122
  %v218 = vpop.f32.mrf.mxu0
  %v219 = vadd.f32 %v97, %v218
  %v220 = vpop.f32.mrf.mxu0
  %v221 = vpop.f32.mrf.mxu0
  %v222 = vadd.f32 %v97, %v221
  %v223 = vpop.f32.mrf.mxu0
  %224 = vmatprep.mubr.bf16.mxu0 0
  %225 = vmatmul.mubr.bf16.gmra.mxu0 %v125
  %v226 = vpop.f32.mrf.mxu0
  %v227 = vadd.f32 %v97, %v226
  %v228 = vpop.f32.mrf.mxu0
  %v229 = vpop.f32.mrf.mxu0
  %v230 = vadd.f32 %v97, %v229
  %v231 = vpop.f32.mrf.mxu0
  %232 = vmatprep.mubr.bf16.mxu0 0
  %233 = vmatmul.mubr.bf16.gmra.mxu0 %v128
  %v234 = vpop.f32.mrf.mxu0
  %v235 = vadd.f32 %v97, %v234
  %v236 = vpop.f32.mrf.mxu0
  %v237 = vpop.f32.mrf.mxu0
  %v238 = vadd.f32 %v97, %v237
  %v239 = vpop.f32.mrf.mxu0
  %240 = vmatprep.mubr.bf16.mxu0 0
  %241 = vmatmul.mubr.bf16.gmra.mxu0 %v131
  %v242 = vpop.f32.mrf.mxu0
  %v243 = vadd.f32 %v97, %v242
  %v244 = vpop.f32.mrf.mxu0
  %v245 = vpop.f32.mrf.mxu0
  %v246 = vadd.f32 %v97, %v245
  %v247 = vpop.f32.mrf.mxu0
  %248 = vmatprep.mubr.bf16.mxu0 0
  %249 = vmatmul.mubr.bf16.gmra.mxu0 %v134
  %v250 = vpop.f32.mrf.mxu0
  %v251 = vadd.f32 %v97, %v250
  %v252 = vpop.f32.mrf.mxu0
  %v253 = vpop.f32.mrf.mxu0
  %v254 = vadd.f32 %v97, %v253
  %v255 = vpop.f32.mrf.mxu0
  %256 = vmatprep.mubr.bf16.mxu0 0
  %257 = vmatmul.mubr.bf16.gmra.mxu0 %v137
  %v258 = vpop.f32.mrf.mxu0
  %v259 = vadd.f32 %v97, %v258
  %v260 = vpop.f32.mrf.mxu0
  %v261 = vpop.f32.mrf.mxu0
  %v262 = vadd.f32 %v97, %v261
  %v263 = vpop.f32.mrf.mxu0
  %264 = vmatprep.mubr.bf16.mxu0 0
  %265 = vmatmul.mubr.bf16.gmra.mxu0 %v140
  %v266 = vpop.f32.mrf.mxu0
  %v267 = vadd.f32 %v97, %v266
  %v268 = vpop.f32.mrf.mxu0
  %v269 = vpop.f32.mrf.mxu0
  %v270 = vadd.f32 %v97, %v269
  %v271 = vpop.f32.mrf.mxu0
  %272 = vmatprep.mubr.bf16.mxu0 0
  %273 = vmatmul.mubr.bf16.gmra.mxu0 %v143
  %v274 = vpop.f32.mrf.mxu0
  %v275 = vadd.f32 %v97, %v274
  %v276 = vpop.f32.mrf.mxu0
  %v277 = vpop.f32.mrf.mxu0
  %v278 = vadd.f32 %v97, %v277
  %v279 = vpop.f32.mrf.mxu0
  %280 = vmatprep.mubr.bf16.mxu0 0
  %281 = vmatmul.mubr.bf16.gmra.mxu0 %v146
  %v282 = vpop.f32.mrf.mxu0
  %v283 = vadd.f32 %v97, %v282
  %v284 = vpop.f32.mrf.mxu0
  %v285 = vpop.f32.mrf.mxu0
  %v286 = vadd.f32 %v97, %v285
  %v287 = vpop.f32.mrf.mxu0
  %288 = vmatprep.mubr.bf16.mxu0 0
  %289 = vmatmul.mubr.bf16.gmra.mxu0 %v149
  %v290 = vpop.f32.mrf.mxu0
  %v291 = vadd.f32 %v97, %v290
  %v292 = vpop.f32.mrf.mxu0
  %v293 = vpop.f32.mrf.mxu0
  %v294 = vadd.f32 %v97, %v293
  %v295 = vpop.f32.mrf.mxu0
  %296 = vmatprep.mubr.bf16.mxu0 0
  %297 = vmatmul.mubr.bf16.gmra.mxu0 %v152
  %v298 = vpop.f32.mrf.mxu0
  %v299 = vadd.f32 %v97, %v298
  %v300 = vpop.f32.mrf.mxu0
  %v301 = vpop.f32.mrf.mxu0
  %v302 = vadd.f32 %v97, %v301
  %v303 = vpop.f32.mrf.mxu0
  %304 = vmatprep.mubr.bf16.mxu0 0
  %305 = vmatmul.mubr.bf16.gmra.mxu0 %v155
  %v306 = vpop.f32.mrf.mxu0
  %v307 = vadd.f32 %v97, %v306
  %v308 = vpop.f32.mrf.mxu0
  %v309 = vpop.f32.mrf.mxu0
  %v310 = vadd.f32 %v97, %v309
  %v311 = vpop.f32.mrf.mxu0
  %312 = vmatprep.mubr.bf16.mxu0 0
  %313 = vmatmul.mubr.bf16.gmra.mxu0 %v158
  %v314 = vpop.f32.mrf.mxu0
  %v315 = vadd.f32 %v97, %v314
  %v316 = vpop.f32.mrf.mxu0
  %v317 = vpop.f32.mrf.mxu0
  %v318 = vadd.f32 %v97, %v317
  %v319 = vpop.f32.mrf.mxu0
  %320 = vdwg.mxu0
  %v321 = vmax.f32 %v195, 0.0
  %v322 = vmax.f32 %v198, 0.0
  %v323 = vmax.f32 %v203, 0.0
  %v324 = vmax.f32 %v206, 0.0
  %v325 = vmax.f32 %v211, 0.0
  %v326 = vmax.f32 %v214, 0.0
  %v327 = vmax.f32 %v219, 0.0
  %v328 = vmax.f32 %v222, 0.0
  %v329 = vmax.f32 %v227, 0.0
  %v330 = vmax.f32 %v230, 0.0
  %v331 = vmax.f32 %v235, 0.0
  %v332 = vmax.f32 %v238, 0.0
  %v333 = vmax.f32 %v243, 0.0
  %v334 = vmax.f32 %v246, 0.0
  %v335 = vmax.f32 %v251, 0.0
  %v336 = vmax.f32 %v254, 0.0
  %v337 = vmax.f32 %v259, 0.0
  %v338 = vmax.f32 %v262, 0.0
  %v339 = vmax.f32 %v267, 0.0
  %v340 = vmax.f32 %v270, 0.0
  %v341 = vmax.f32 %v275, 0.0
  %v342 = vmax.f32 %v278, 0.0
  %v343 = vmax.f32 %v283, 0.0
  %v344 = vmax.f32 %v286, 0.0
  %v345 = vmax.f32 %v291, 0.0
  %v346 = vmax.f32 %v294, 0.0
  %v347 = vmax.f32 %v299, 0.0
  %v348 = vmax.f32 %v302, 0.0
  %v349 = vmax.f32 %v307, 0.0
  %v350 = vmax.f32 %v310, 0.0
  %v351 = vmax.f32 %v315, 0.0
  %v352 = vmax.f32 %v318, 0.0
  %v353 = vpack.c.bf16 %v322, %v321
  %v354 = vpack.c.bf16 %v324, %v323
  %v355 = vpack.c.bf16 %v326, %v325
  %v356 = vpack.c.bf16 %v328, %v327
  %v357 = vpack.c.bf16 %v330, %v329
  %v358 = vpack.c.bf16 %v332, %v331
  %v359 = vpack.c.bf16 %v334, %v333
  %v360 = vpack.c.bf16 %v336, %v335
  %v361 = vpack.c.bf16 %v338, %v337
  %v362 = vpack.c.bf16 %v340, %v339
  %v363 = vpack.c.bf16 %v342, %v341
  %v364 = vpack.c.bf16 %v344, %v343
  %v365 = vpack.c.bf16 %v346, %v345
  %v366 = vpack.c.bf16 %v348, %v347
  %v367 = vpack.c.bf16 %v350, %v349
  %v368 = vpack.c.bf16 %v352, %v351
  %v369 = vld [vmem:[%s4] sm:$0xf]
  %v370 = vld [vmem:[%s4 + $0x4] sm:$0xf]
  %v371 = vld [vmem:[%s4 + $0x8] sm:$0xf]
  %v372 = vld [vmem:[%s4 + $0xc] sm:$0xf]
  %v373 = vld [vmem:[%s4 + $0x10] sm:$0xf]
  %v374 = vld [vmem:[%s4 + $0x14] sm:$0xf]
  %v375 = vld [vmem:[%s4 + $0x18] sm:$0xf]
  %v376 = vld [vmem:[%s4 + $0x1c] sm:$0xf]
  %v377 = vld [vmem:[%s4 + $0x20] sm:$0xf]
  %v378 = vld [vmem:[%s4 + $0x24] sm:$0xf]
  %v379 = vld [vmem:[%s4 + $0x28] sm:$0xf]
  %v380 = vld [vmem:[%s4 + $0x2c] sm:$0xf]
  %v381 = vld [vmem:[%s4 + $0x30] sm:$0xf]
  %v382 = vld [vmem:[%s4 + $0x34] sm:$0xf]
  %v383 = vld [vmem:[%s4 + $0x38] sm:$0xf]
  %v384 = vld [vmem:[%s4 + $0x3c] sm:$0xf]
  %v386 = vlaneseq
  %v387 = vshrl.u32 %v386, 7
  %v388 = vsub.s32 0, %v387
  %v389 = vrot.slane %v86, %v388
  %v407 = vunpack.c.l.b16 %v369
  %v408 = vunpack.c.l.b16 %v370
  %v409 = vunpack.c.l.b16 %v371
  %v410 = vunpack.c.l.b16 %v372
  %v411 = vunpack.c.l.b16 %v373
  %v412 = vunpack.c.l.b16 %v374
  %v413 = vunpack.c.l.b16 %v375
  %v414 = vunpack.c.l.b16 %v376
  %v415 = vunpack.c.l.b16 %v377
  %v416 = vunpack.c.l.b16 %v378
  %v417 = vunpack.c.l.b16 %v379
  %v418 = vunpack.c.l.b16 %v380
  %v419 = vunpack.c.l.b16 %v381
  %v420 = vunpack.c.l.b16 %v382
  %v421 = vunpack.c.l.b16 %v383
  %v422 = vunpack.c.l.b16 %v384
  %v423 = vpack.c.b16 %v408, %v407
  %v424 = vpack.c.b16 %v410, %v409
  %v425 = vpack.c.b16 %v412, %v411
  %v426 = vpack.c.b16 %v414, %v413
  %v427 = vpack.c.b16 %v416, %v415
  %v428 = vpack.c.b16 %v418, %v417
  %v429 = vpack.c.b16 %v420, %v419
  %v430 = vpack.c.b16 %v422, %v421
  %439 = vmatprep.subr.bf16.mxu0 0
  %440 = vmatpush1.bf16.msra.mxu0 %v430
  %441 = vmatprep.subr.bf16.mxu0 0
  %442 = vmatpush1.bf16.msra.mxu0 %v429
  %443 = vmatprep.subr.bf16.mxu0 0
  %444 = vmatpush1.bf16.msra.mxu0 %v428
  %445 = vmatprep.subr.bf16.mxu0 0
  %446 = vmatpush1.bf16.msra.mxu0 %v427
  %447 = vmatprep.subr.bf16.mxu0 0
  %448 = vmatpush1.bf16.msra.mxu0 %v426
  %449 = vmatprep.subr.bf16.mxu0 0
  %450 = vmatpush1.bf16.msra.mxu0 %v425
  %451 = vmatprep.subr.bf16.mxu0 0
  %452 = vmatpush1.bf16.msra.mxu0 %v424
  %453 = vmatprep.subr.bf16.mxu0 0
  %454 = vmatpush1.bf16.msra.mxu0 %v423
  %455 = vmatprep.subr.bf16.mxu0 0
  %456 = vmatpush2.bf16.msra.mxu0 0
  %457 = vmatprep.subr.bf16.mxu0 0
  %458 = vmatpush2.bf16.msra.mxu0 0
  %459 = vmatprep.subr.bf16.mxu0 0
  %460 = vmatpush2.bf16.msra.mxu0 0
  %461 = vmatprep.subr.bf16.mxu0 0
  %462 = vmatpush2.bf16.msra.mxu0 0
  %463 = vmatprep.subr.bf16.mxu0 0
  %464 = vmatpush2.bf16.msra.mxu0 0
  %465 = vmatprep.subr.bf16.mxu0 0
  %466 = vmatpush2.bf16.msra.mxu0 0
  %467 = vmatprep.subr.bf16.mxu0 0
  %468 = vmatpush2.bf16.msra.mxu0 0
  %469 = vmatprep.subr.bf16.mxu0 0
  %470 = vmatpush2.bf16.msra.mxu0 0
  %471 = vmatprep.mubr.bf16.mxu0 0
  %472 = vmatmul.mubr.bf16.gmra.mxu0 %v353
  %v473 = vpop.f32.mrf.mxu0
  %v474 = vadd.f32 %v389, %v473
  %v475 = vpop.f32.mrf.mxu0
  %v476 = vpop.f32.mrf.mxu0
  %v477 = vadd.f32 %v389, %v476
  %v478 = vpop.f32.mrf.mxu0
  %479 = vmatprep.mubr.bf16.mxu0 0
  %480 = vmatmul.mubr.bf16.gmra.mxu0 %v354
  %v481 = vpop.f32.mrf.mxu0
  %v482 = vadd.f32 %v389, %v481
  %v483 = vpop.f32.mrf.mxu0
  %v484 = vpop.f32.mrf.mxu0
  %v485 = vadd.f32 %v389, %v484
  %v486 = vpop.f32.mrf.mxu0
  %487 = vmatprep.mubr.bf16.mxu0 0
  %488 = vmatmul.mubr.bf16.gmra.mxu0 %v355
  %v489 = vpop.f32.mrf.mxu0
  %v490 = vadd.f32 %v389, %v489
  %v491 = vpop.f32.mrf.mxu0
  %v492 = vpop.f32.mrf.mxu0
  %v493 = vadd.f32 %v389, %v492
  %v494 = vpop.f32.mrf.mxu0
  %495 = vmatprep.mubr.bf16.mxu0 0
  %496 = vmatmul.mubr.bf16.gmra.mxu0 %v356
  %v497 = vpop.f32.mrf.mxu0
  %v498 = vadd.f32 %v389, %v497
  %v499 = vpop.f32.mrf.mxu0
  %v500 = vpop.f32.mrf.mxu0
  %v501 = vadd.f32 %v389, %v500
  %v502 = vpop.f32.mrf.mxu0
  %503 = vmatprep.mubr.bf16.mxu0 0
  %504 = vmatmul.mubr.bf16.gmra.mxu0 %v357
  %v505 = vpop.f32.mrf.mxu0
  %v506 = vadd.f32 %v389, %v505
  %v507 = vpop.f32.mrf.mxu0
  %v508 = vpop.f32.mrf.mxu0
  %v509 = vadd.f32 %v389, %v508
  %v510 = vpop.f32.mrf.mxu0
  %511 = vmatprep.mubr.bf16.mxu0 0
  %512 = vmatmul.mubr.bf16.gmra.mxu0 %v358
  %v513 = vpop.f32.mrf.mxu0
  %v514 = vadd.f32 %v389, %v513
  %v515 = vpop.f32.mrf.mxu0
  %v516 = vpop.f32.mrf.mxu0
  %v517 = vadd.f32 %v389, %v516
  %v518 = vpop.f32.mrf.mxu0
  %519 = vmatprep.mubr.bf16.mxu0 0
  %520 = vmatmul.mubr.bf16.gmra.mxu0 %v359
  %v521 = vpop.f32.mrf.mxu0
  %v522 = vadd.f32 %v389, %v521
  %v523 = vpop.f32.mrf.mxu0
  %v524 = vpop.f32.mrf.mxu0
  %v525 = vadd.f32 %v389, %v524
  %v526 = vpop.f32.mrf.mxu0
  %527 = vmatprep.mubr.bf16.mxu0 0
  %528 = vmatmul.mubr.bf16.gmra.mxu0 %v360
  %v529 = vpop.f32.mrf.mxu0
  %v530 = vadd.f32 %v389, %v529
  %v531 = vpop.f32.mrf.mxu0
  %v532 = vpop.f32.mrf.mxu0
  %v533 = vadd.f32 %v389, %v532
  %v534 = vpop.f32.mrf.mxu0
  %535 = vmatprep.mubr.bf16.mxu0 0
  %536 = vmatmul.mubr.bf16.gmra.mxu0 %v361
  %v537 = vpop.f32.mrf.mxu0
  %v538 = vadd.f32 %v389, %v537
  %v539 = vpop.f32.mrf.mxu0
  %v540 = vpop.f32.mrf.mxu0
  %v541 = vadd.f32 %v389, %v540
  %v542 = vpop.f32.mrf.mxu0
  %543 = vmatprep.mubr.bf16.mxu0 0
  %544 = vmatmul.mubr.bf16.gmra.mxu0 %v362
  %v545 = vpop.f32.mrf.mxu0
  %v546 = vadd.f32 %v389, %v545
  %v547 = vpop.f32.mrf.mxu0
  %v548 = vpop.f32.mrf.mxu0
  %v549 = vadd.f32 %v389, %v548
  %v550 = vpop.f32.mrf.mxu0
  %551 = vmatprep.mubr.bf16.mxu0 0
  %552 = vmatmul.mubr.bf16.gmra.mxu0 %v363
  %v553 = vpop.f32.mrf.mxu0
  %v554 = vadd.f32 %v389, %v553
  %v555 = vpop.f32.mrf.mxu0
  %v556 = vpop.f32.mrf.mxu0
  %v557 = vadd.f32 %v389, %v556
  %v558 = vpop.f32.mrf.mxu0
  %559 = vmatprep.mubr.bf16.mxu0 0
  %560 = vmatmul.mubr.bf16.gmra.mxu0 %v364
  %v561 = vpop.f32.mrf.mxu0
  %v562 = vadd.f32 %v389, %v561
  %v563 = vpop.f32.mrf.mxu0
  %v564 = vpop.f32.mrf.mxu0
  %v565 = vadd.f32 %v389, %v564
  %v566 = vpop.f32.mrf.mxu0
  %567 = vmatprep.mubr.bf16.mxu0 0
  %568 = vmatmul.mubr.bf16.gmra.mxu0 %v365
  %v569 = vpop.f32.mrf.mxu0
  %v570 = vadd.f32 %v389, %v569
  %v571 = vpop.f32.mrf.mxu0
  %v572 = vpop.f32.mrf.mxu0
  %v573 = vadd.f32 %v389, %v572
  %v574 = vpop.f32.mrf.mxu0
  %575 = vmatprep.mubr.bf16.mxu0 0
  %576 = vmatmul.mubr.bf16.gmra.mxu0 %v366
  %v577 = vpop.f32.mrf.mxu0
  %v578 = vadd.f32 %v389, %v577
  %v579 = vpop.f32.mrf.mxu0
  %v580 = vpop.f32.mrf.mxu0
  %v581 = vadd.f32 %v389, %v580
  %v582 = vpop.f32.mrf.mxu0
  %583 = vmatprep.mubr.bf16.mxu0 0
  %584 = vmatmul.mubr.bf16.gmra.mxu0 %v367
  %v585 = vpop.f32.mrf.mxu0
  %v586 = vadd.f32 %v389, %v585
  %v587 = vpop.f32.mrf.mxu0
  %v588 = vpop.f32.mrf.mxu0
  %v589 = vadd.f32 %v389, %v588
  %v590 = vpop.f32.mrf.mxu0
  %591 = vmatprep.mubr.bf16.mxu0 0
  %592 = vmatmul.mubr.bf16.gmra.mxu0 %v368
  %v593 = vpop.f32.mrf.mxu0
  %v594 = vadd.f32 %v389, %v593
  %v595 = vpop.f32.mrf.mxu0
  %v596 = vpop.f32.mrf.mxu0
  %v597 = vadd.f32 %v389, %v596
  %v598 = vpop.f32.mrf.mxu0
  %599 = vdwg.mxu0
  %v600 = vmax.f32 %v474, 0.0
  %v601 = vmax.f32 %v477, 0.0
  %v602 = vmax.f32 %v482, 0.0
  %v603 = vmax.f32 %v485, 0.0
  %v604 = vmax.f32 %v490, 0.0
  %v605 = vmax.f32 %v493, 0.0
  %v606 = vmax.f32 %v498, 0.0
  %v607 = vmax.f32 %v501, 0.0
  %v608 = vmax.f32 %v506, 0.0
  %v609 = vmax.f32 %v509, 0.0
  %v610 = vmax.f32 %v514, 0.0
  %v611 = vmax.f32 %v517, 0.0
  %v612 = vmax.f32 %v522, 0.0
  %v613 = vmax.f32 %v525, 0.0
  %v614 = vmax.f32 %v530, 0.0
  %v615 = vmax.f32 %v533, 0.0
  %v616 = vmax.f32 %v538, 0.0
  %v617 = vmax.f32 %v541, 0.0
  %v618 = vmax.f32 %v546, 0.0
  %v619 = vmax.f32 %v549, 0.0
  %v620 = vmax.f32 %v554, 0.0
  %v621 = vmax.f32 %v557, 0.0
  %v622 = vmax.f32 %v562, 0.0
  %v623 = vmax.f32 %v565, 0.0
  %v624 = vmax.f32 %v570, 0.0
  %v625 = vmax.f32 %v573, 0.0
  %v626 = vmax.f32 %v578, 0.0
  %v627 = vmax.f32 %v581, 0.0
  %v628 = vmax.f32 %v586, 0.0
  %v629 = vmax.f32 %v589, 0.0
  %v630 = vmax.f32 %v594, 0.0
  %v631 = vmax.f32 %v597, 0.0
  %v632 = vpack.c.bf16 %v601, %v600
  %v633 = vpack.c.bf16 %v603, %v602
  %v634 = vpack.c.bf16 %v605, %v604
  %v635 = vpack.c.bf16 %v607, %v606
  %v636 = vpack.c.bf16 %v609, %v608
  %v637 = vpack.c.bf16 %v611, %v610
  %v638 = vpack.c.bf16 %v613, %v612
  %v639 = vpack.c.bf16 %v615, %v614
  %v640 = vpack.c.bf16 %v617, %v616
  %v641 = vpack.c.bf16 %v619, %v618
  %v642 = vpack.c.bf16 %v621, %v620
  %v643 = vpack.c.bf16 %v623, %v622
  %v644 = vpack.c.bf16 %v625, %v624
  %v645 = vpack.c.bf16 %v627, %v626
  %v646 = vpack.c.bf16 %v629, %v628
  %v647 = vpack.c.bf16 %v631, %v630
  %v648 = vld [vmem:[%s6] sm:$0xf]
  %v649 = vld [vmem:[%s6 + $0x4] sm:$0xf]
  %v650 = vld [vmem:[%s6 + $0x8] sm:$0xf]
  %v651 = vld [vmem:[%s6 + $0xc] sm:$0xf]
  %v652 = vld [vmem:[%s6 + $0x10] sm:$0xf]
  %v653 = vld [vmem:[%s6 + $0x14] sm:$0xf]
  %v654 = vld [vmem:[%s6 + $0x18] sm:$0xf]
  %v655 = vld [vmem:[%s6 + $0x1c] sm:$0xf]
  %v656 = vld [vmem:[%s6 + $0x20] sm:$0xf]
  %v657 = vld [vmem:[%s6 + $0x24] sm:$0xf]
  %v658 = vld [vmem:[%s6 + $0x28] sm:$0xf]
  %v659 = vld [vmem:[%s6 + $0x2c] sm:$0xf]
  %v660 = vld [vmem:[%s6 + $0x30] sm:$0xf]
  %v661 = vld [vmem:[%s6 + $0x34] sm:$0xf]
  %v662 = vld [vmem:[%s6 + $0x38] sm:$0xf]
  %v663 = vld [vmem:[%s6 + $0x3c] sm:$0xf]
  %v665 = vlaneseq
  %v666 = vshrl.u32 %v665, 7
  %v667 = vsub.s32 0, %v666
  %v668 = vrot.slane %v87, %v667
  %v686 = vunpack.c.l.b16 %v648
  %v687 = vunpack.c.l.b16 %v649
  %v688 = vunpack.c.l.b16 %v650
  %v689 = vunpack.c.l.b16 %v651
  %v690 = vunpack.c.l.b16 %v652
  %v691 = vunpack.c.l.b16 %v653
  %v692 = vunpack.c.l.b16 %v654
  %v693 = vunpack.c.l.b16 %v655
  %v694 = vunpack.c.l.b16 %v656
  %v695 = vunpack.c.l.b16 %v657
  %v696 = vunpack.c.l.b16 %v658
  %v697 = vunpack.c.l.b16 %v659
  %v698 = vunpack.c.l.b16 %v660
  %v699 = vunpack.c.l.b16 %v661
  %v700 = vunpack.c.l.b16 %v662
  %v701 = vunpack.c.l.b16 %v663
  %v702 = vpack.c.b16 %v687, %v686
  %v703 = vpack.c.b16 %v689, %v688
  %v704 = vpack.c.b16 %v691, %v690
  %v705 = vpack.c.b16 %v693, %v692
  %v706 = vpack.c.b16 %v695, %v694
  %v707 = vpack.c.b16 %v697, %v696
  %v708 = vpack.c.b16 %v699, %v698
  %v709 = vpack.c.b16 %v701, %v700
  %718 = vmatprep.subr.bf16.mxu0 0
  %719 = vmatpush1.bf16.msra.mxu0 %v709
  %720 = vmatprep.subr.bf16.mxu0 0
  %721 = vmatpush1.bf16.msra.mxu0 %v708
  %722 = vmatprep.subr.bf16.mxu0 0
  %723 = vmatpush1.bf16.msra.mxu0 %v707
  %724 = vmatprep.subr.bf16.mxu0 0
  %725 = vmatpush1.bf16.msra.mxu0 %v706
  %726 = vmatprep.subr.bf16.mxu0 0
  %727 = vmatpush1.bf16.msra.mxu0 %v705
  %728 = vmatprep.subr.bf16.mxu0 0
  %729 = vmatpush1.bf16.msra.mxu0 %v704
  %730 = vmatprep.subr.bf16.mxu0 0
  %731 = vmatpush1.bf16.msra.mxu0 %v703
  %732 = vmatprep.subr.bf16.mxu0 0
  %733 = vmatpush1.bf16.msra.mxu0 %v702
  %734 = vmatprep.subr.bf16.mxu0 0
  %735 = vmatpush2.bf16.msra.mxu0 0
  %736 = vmatprep.subr.bf16.mxu0 0
  %737 = vmatpush2.bf16.msra.mxu0 0
  %738 = vmatprep.subr.bf16.mxu0 0
  %739 = vmatpush2.bf16.msra.mxu0 0
  %740 = vmatprep.subr.bf16.mxu0 0
  %741 = vmatpush2.bf16.msra.mxu0 0
  %742 = vmatprep.subr.bf16.mxu0 0
  %743 = vmatpush2.bf16.msra.mxu0 0
  %744 = vmatprep.subr.bf16.mxu0 0
  %745 = vmatpush2.bf16.msra.mxu0 0
  %746 = vmatprep.subr.bf16.mxu0 0
  %747 = vmatpush2.bf16.msra.mxu0 0
  %748 = vmatprep.subr.bf16.mxu0 0
  %749 = vmatpush2.bf16.msra.mxu0 0
  %750 = vmatprep.mubr.bf16.mxu0 0
  %751 = vmatmul.mubr.bf16.gmra.mxu0 %v632
  %v752 = vpop.f32.mrf.mxu0
  %v753 = vadd.f32 %v668, %v752
  %v754 = vpop.f32.mrf.mxu0
  %v755 = vpop.f32.mrf.mxu0
  %v756 = vadd.f32 %v668, %v755
  %v757 = vpop.f32.mrf.mxu0
  %758 = vmatprep.mubr.bf16.mxu0 0
  %759 = vmatmul.mubr.bf16.gmra.mxu0 %v633
  %v760 = vpop.f32.mrf.mxu0
  %v761 = vadd.f32 %v668, %v760
  %v762 = vpop.f32.mrf.mxu0
  %v763 = vpop.f32.mrf.mxu0
  %v764 = vadd.f32 %v668, %v763
  %v765 = vpop.f32.mrf.mxu0
  %766 = vmatprep.mubr.bf16.mxu0 0
  %767 = vmatmul.mubr.bf16.gmra.mxu0 %v634
  %v768 = vpop.f32.mrf.mxu0
  %v769 = vadd.f32 %v668, %v768
  %v770 = vpop.f32.mrf.mxu0
  %v771 = vpop.f32.mrf.mxu0
  %v772 = vadd.f32 %v668, %v771
  %v773 = vpop.f32.mrf.mxu0
  %774 = vmatprep.mubr.bf16.mxu0 0
  %775 = vmatmul.mubr.bf16.gmra.mxu0 %v635
  %v776 = vpop.f32.mrf.mxu0
  %v777 = vadd.f32 %v668, %v776
  %v778 = vpop.f32.mrf.mxu0
  %v779 = vpop.f32.mrf.mxu0
  %v780 = vadd.f32 %v668, %v779
  %v781 = vpop.f32.mrf.mxu0
  %782 = vmatprep.mubr.bf16.mxu0 0
  %783 = vmatmul.mubr.bf16.gmra.mxu0 %v636
  %v784 = vpop.f32.mrf.mxu0
  %v785 = vadd.f32 %v668, %v784
  %v786 = vpop.f32.mrf.mxu0
  %v787 = vpop.f32.mrf.mxu0
  %v788 = vadd.f32 %v668, %v787
  %v789 = vpop.f32.mrf.mxu0
  %790 = vmatprep.mubr.bf16.mxu0 0
  %791 = vmatmul.mubr.bf16.gmra.mxu0 %v637
  %v792 = vpop.f32.mrf.mxu0
  %v793 = vadd.f32 %v668, %v792
  %v794 = vpop.f32.mrf.mxu0
  %v795 = vpop.f32.mrf.mxu0
  %v796 = vadd.f32 %v668, %v795
  %v797 = vpop.f32.mrf.mxu0
  %798 = vmatprep.mubr.bf16.mxu0 0
  %799 = vmatmul.mubr.bf16.gmra.mxu0 %v638
  %v800 = vpop.f32.mrf.mxu0
  %v801 = vadd.f32 %v668, %v800
  %v802 = vpop.f32.mrf.mxu0
  %v803 = vpop.f32.mrf.mxu0
  %v804 = vadd.f32 %v668, %v803
  %v805 = vpop.f32.mrf.mxu0
  %806 = vmatprep.mubr.bf16.mxu0 0
  %807 = vmatmul.mubr.bf16.gmra.mxu0 %v639
  %v808 = vpop.f32.mrf.mxu0
  %v809 = vadd.f32 %v668, %v808
  %v810 = vpop.f32.mrf.mxu0
  %v811 = vpop.f32.mrf.mxu0
  %v812 = vadd.f32 %v668, %v811
  %v813 = vpop.f32.mrf.mxu0
  %814 = vmatprep.mubr.bf16.mxu0 0
  %815 = vmatmul.mubr.bf16.gmra.mxu0 %v640
  %v816 = vpop.f32.mrf.mxu0
  %v817 = vadd.f32 %v668, %v816
  %v818 = vpop.f32.mrf.mxu0
  %v819 = vpop.f32.mrf.mxu0
  %v820 = vadd.f32 %v668, %v819
  %v821 = vpop.f32.mrf.mxu0
  %822 = vmatprep.mubr.bf16.mxu0 0
  %823 = vmatmul.mubr.bf16.gmra.mxu0 %v641
  %v824 = vpop.f32.mrf.mxu0
  %v825 = vadd.f32 %v668, %v824
  %v826 = vpop.f32.mrf.mxu0
  %v827 = vpop.f32.mrf.mxu0
  %v828 = vadd.f32 %v668, %v827
  %v829 = vpop.f32.mrf.mxu0
  %830 = vmatprep.mubr.bf16.mxu0 0
  %831 = vmatmul.mubr.bf16.gmra.mxu0 %v642
  %v832 = vpop.f32.mrf.mxu0
  %v833 = vadd.f32 %v668, %v832
  %v834 = vpop.f32.mrf.mxu0
  %v835 = vpop.f32.mrf.mxu0
  %v836 = vadd.f32 %v668, %v835
  %v837 = vpop.f32.mrf.mxu0
  %838 = vmatprep.mubr.bf16.mxu0 0
  %839 = vmatmul.mubr.bf16.gmra.mxu0 %v643
  %v840 = vpop.f32.mrf.mxu0
  %v841 = vadd.f32 %v668, %v840
  %v842 = vpop.f32.mrf.mxu0
  %v843 = vpop.f32.mrf.mxu0
  %v844 = vadd.f32 %v668, %v843
  %v845 = vpop.f32.mrf.mxu0
  %846 = vmatprep.mubr.bf16.mxu0 0
  %847 = vmatmul.mubr.bf16.gmra.mxu0 %v644
  %v848 = vpop.f32.mrf.mxu0
  %v849 = vadd.f32 %v668, %v848
  %v850 = vpop.f32.mrf.mxu0
  %v851 = vpop.f32.mrf.mxu0
  %v852 = vadd.f32 %v668, %v851
  %v853 = vpop.f32.mrf.mxu0
  %854 = vmatprep.mubr.bf16.mxu0 0
  %855 = vmatmul.mubr.bf16.gmra.mxu0 %v645
  %v856 = vpop.f32.mrf.mxu0
  %v857 = vadd.f32 %v668, %v856
  %v858 = vpop.f32.mrf.mxu0
  %v859 = vpop.f32.mrf.mxu0
  %v860 = vadd.f32 %v668, %v859
  %v861 = vpop.f32.mrf.mxu0
  %862 = vmatprep.mubr.bf16.mxu0 0
  %863 = vmatmul.mubr.bf16.gmra.mxu0 %v646
  %v864 = vpop.f32.mrf.mxu0
  %v865 = vadd.f32 %v668, %v864
  %v866 = vpop.f32.mrf.mxu0
  %v867 = vpop.f32.mrf.mxu0
  %v868 = vadd.f32 %v668, %v867
  %v869 = vpop.f32.mrf.mxu0
  %870 = vmatprep.mubr.bf16.mxu0 0
  %871 = vmatmul.mubr.bf16.gmra.mxu0 %v647
  %v872 = vpop.f32.mrf.mxu0
  %v873 = vadd.f32 %v668, %v872
  %v874 = vpop.f32.mrf.mxu0
  %v875 = vpop.f32.mrf.mxu0
  %v876 = vadd.f32 %v668, %v875
  %v877 = vpop.f32.mrf.mxu0
  %878 = vdwg.mxu0
  %v879 = vmax.f32 %v753, 0.0
  %v880 = vmax.f32 %v756, 0.0
  %v881 = vmax.f32 %v761, 0.0
  %v882 = vmax.f32 %v764, 0.0
  %v883 = vmax.f32 %v769, 0.0
  %v884 = vmax.f32 %v772, 0.0
  %v885 = vmax.f32 %v777, 0.0
  %v886 = vmax.f32 %v780, 0.0
  %v887 = vmax.f32 %v785, 0.0
  %v888 = vmax.f32 %v788, 0.0
  %v889 = vmax.f32 %v793, 0.0
  %v890 = vmax.f32 %v796, 0.0
  %v891 = vmax.f32 %v801, 0.0
  %v892 = vmax.f32 %v804, 0.0
  %v893 = vmax.f32 %v809, 0.0
  %v894 = vmax.f32 %v812, 0.0
  %v895 = vmax.f32 %v817, 0.0
  %v896 = vmax.f32 %v820, 0.0
  %v897 = vmax.f32 %v825, 0.0
  %v898 = vmax.f32 %v828, 0.0
  %v899 = vmax.f32 %v833, 0.0
  %v900 = vmax.f32 %v836, 0.0
  %v901 = vmax.f32 %v841, 0.0
  %v902 = vmax.f32 %v844, 0.0
  %v903 = vmax.f32 %v849, 0.0
  %v904 = vmax.f32 %v852, 0.0
  %v905 = vmax.f32 %v857, 0.0
  %v906 = vmax.f32 %v860, 0.0
  %v907 = vmax.f32 %v865, 0.0
  %v908 = vmax.f32 %v868, 0.0
  %v909 = vmax.f32 %v873, 0.0
  %v910 = vmax.f32 %v876, 0.0
  %v911 = vpack.c.bf16 %v880, %v879
  %v912 = vpack.c.bf16 %v882, %v881
  %v913 = vpack.c.bf16 %v884, %v883
  %v914 = vpack.c.bf16 %v886, %v885
  %v915 = vpack.c.bf16 %v888, %v887
  %v916 = vpack.c.bf16 %v890, %v889
  %v917 = vpack.c.bf16 %v892, %v891
  %v918 = vpack.c.bf16 %v894, %v893
  %v919 = vpack.c.bf16 %v896, %v895
  %v920 = vpack.c.bf16 %v898, %v897
  %v921 = vpack.c.bf16 %v900, %v899
  %v922 = vpack.c.bf16 %v902, %v901
  %v923 = vpack.c.bf16 %v904, %v903
  %v924 = vpack.c.bf16 %v906, %v905
  %v925 = vpack.c.bf16 %v908, %v907
  %v926 = vpack.c.bf16 %v910, %v909
  %v927 = vld [vmem:[%s8] sm:$0xf]
  %v928 = vld [vmem:[%s8 + $0x4] sm:$0xf]
  %v929 = vld [vmem:[%s8 + $0x8] sm:$0xf]
  %v930 = vld [vmem:[%s8 + $0xc] sm:$0xf]
  %v931 = vld [vmem:[%s8 + $0x10] sm:$0xf]
  %v932 = vld [vmem:[%s8 + $0x14] sm:$0xf]
  %v933 = vld [vmem:[%s8 + $0x18] sm:$0xf]
  %v934 = vld [vmem:[%s8 + $0x1c] sm:$0xf]
  %v935 = vld [vmem:[%s8 + $0x20] sm:$0xf]
  %v936 = vld [vmem:[%s8 + $0x24] sm:$0xf]
  %v937 = vld [vmem:[%s8 + $0x28] sm:$0xf]
  %v938 = vld [vmem:[%s8 + $0x2c] sm:$0xf]
  %v939 = vld [vmem:[%s8 + $0x30] sm:$0xf]
  %v940 = vld [vmem:[%s8 + $0x34] sm:$0xf]
  %v941 = vld [vmem:[%s8 + $0x38] sm:$0xf]
  %v942 = vld [vmem:[%s8 + $0x3c] sm:$0xf]
  %v944 = vlaneseq
  %v945 = vshrl.u32 %v944, 7
  %v946 = vsub.s32 0, %v945
  %v947 = vrot.slane %v88, %v946
  %v965 = vunpack.c.l.b16 %v927
  %v966 = vunpack.c.l.b16 %v928
  %v967 = vunpack.c.l.b16 %v929
  %v968 = vunpack.c.l.b16 %v930
  %v969 = vunpack.c.l.b16 %v931
  %v970 = vunpack.c.l.b16 %v932
  %v971 = vunpack.c.l.b16 %v933
  %v972 = vunpack.c.l.b16 %v934
  %v973 = vunpack.c.l.b16 %v935
  %v974 = vunpack.c.l.b16 %v936
  %v975 = vunpack.c.l.b16 %v937
  %v976 = vunpack.c.l.b16 %v938
  %v977 = vunpack.c.l.b16 %v939
  %v978 = vunpack.c.l.b16 %v940
  %v979 = vunpack.c.l.b16 %v941
  %v980 = vunpack.c.l.b16 %v942
  %v981 = vpack.c.b16 %v966, %v965
  %v982 = vpack.c.b16 %v968, %v967
  %v983 = vpack.c.b16 %v970, %v969
  %v984 = vpack.c.b16 %v972, %v971
  %v985 = vpack.c.b16 %v974, %v973
  %v986 = vpack.c.b16 %v976, %v975
  %v987 = vpack.c.b16 %v978, %v977
  %v988 = vpack.c.b16 %v980, %v979
  %997 = vmatprep.subr.bf16.mxu0 0
  %998 = vmatpush1.bf16.msra.mxu0 %v988
  %999 = vmatprep.subr.bf16.mxu0 0
  %1000 = vmatpush1.bf16.msra.mxu0 %v987
  %1001 = vmatprep.subr.bf16.mxu0 0
  %1002 = vmatpush1.bf16.msra.mxu0 %v986
  %1003 = vmatprep.subr.bf16.mxu0 0
  %1004 = vmatpush1.bf16.msra.mxu0 %v985
  %1005 = vmatprep.subr.bf16.mxu0 0
  %1006 = vmatpush1.bf16.msra.mxu0 %v984
  %1007 = vmatprep.subr.bf16.mxu0 0
  %1008 = vmatpush1.bf16.msra.mxu0 %v983
  %1009 = vmatprep.subr.bf16.mxu0 0
  %1010 = vmatpush1.bf16.msra.mxu0 %v982
  %1011 = vmatprep.subr.bf16.mxu0 0
  %1012 = vmatpush1.bf16.msra.mxu0 %v981
  %1013 = vmatprep.subr.bf16.mxu0 0
  %1014 = vmatpush2.bf16.msra.mxu0 0
  %1015 = vmatprep.subr.bf16.mxu0 0
  %1016 = vmatpush2.bf16.msra.mxu0 0
  %1017 = vmatprep.subr.bf16.mxu0 0
  %1018 = vmatpush2.bf16.msra.mxu0 0
  %1019 = vmatprep.subr.bf16.mxu0 0
  %1020 = vmatpush2.bf16.msra.mxu0 0
  %1021 = vmatprep.subr.bf16.mxu0 0
  %1022 = vmatpush2.bf16.msra.mxu0 0
  %1023 = vmatprep.subr.bf16.mxu0 0
  %1024 = vmatpush2.bf16.msra.mxu0 0
  %1025 = vmatprep.subr.bf16.mxu0 0
  %1026 = vmatpush2.bf16.msra.mxu0 0
  %1027 = vmatprep.subr.bf16.mxu0 0
  %1028 = vmatpush2.bf16.msra.mxu0 0
  %1029 = vmatprep.mubr.bf16.mxu0 0
  %1030 = vmatmul.mubr.bf16.gmra.mxu0 %v911
  %v1031 = vpop.f32.mrf.mxu0
  %v1032 = vadd.f32 %v947, %v1031
  %v1033 = vpop.f32.mrf.mxu0
  %v1034 = vpop.f32.mrf.mxu0
  %v1035 = vadd.f32 %v947, %v1034
  %v1036 = vpop.f32.mrf.mxu0
  %1037 = vmatprep.mubr.bf16.mxu0 0
  %1038 = vmatmul.mubr.bf16.gmra.mxu0 %v912
  %v1039 = vpop.f32.mrf.mxu0
  %v1040 = vadd.f32 %v947, %v1039
  %v1041 = vpop.f32.mrf.mxu0
  %v1042 = vpop.f32.mrf.mxu0
  %v1043 = vadd.f32 %v947, %v1042
  %v1044 = vpop.f32.mrf.mxu0
  %1045 = vmatprep.mubr.bf16.mxu0 0
  %1046 = vmatmul.mubr.bf16.gmra.mxu0 %v913
  %v1047 = vpop.f32.mrf.mxu0
  %v1048 = vadd.f32 %v947, %v1047
  %v1049 = vpop.f32.mrf.mxu0
  %v1050 = vpop.f32.mrf.mxu0
  %v1051 = vadd.f32 %v947, %v1050
  %v1052 = vpop.f32.mrf.mxu0
  %1053 = vmatprep.mubr.bf16.mxu0 0
  %1054 = vmatmul.mubr.bf16.gmra.mxu0 %v914
  %v1055 = vpop.f32.mrf.mxu0
  %v1056 = vadd.f32 %v947, %v1055
  %v1057 = vpop.f32.mrf.mxu0
  %v1058 = vpop.f32.mrf.mxu0
  %v1059 = vadd.f32 %v947, %v1058
  %v1060 = vpop.f32.mrf.mxu0
  %1061 = vmatprep.mubr.bf16.mxu0 0
  %1062 = vmatmul.mubr.bf16.gmra.mxu0 %v915
  %v1063 = vpop.f32.mrf.mxu0
  %v1064 = vadd.f32 %v947, %v1063
  %v1065 = vpop.f32.mrf.mxu0
  %v1066 = vpop.f32.mrf.mxu0
  %v1067 = vadd.f32 %v947, %v1066
  %v1068 = vpop.f32.mrf.mxu0
  %1069 = vmatprep.mubr.bf16.mxu0 0
  %1070 = vmatmul.mubr.bf16.gmra.mxu0 %v916
  %v1071 = vpop.f32.mrf.mxu0
  %v1072 = vadd.f32 %v947, %v1071
  %v1073 = vpop.f32.mrf.mxu0
  %v1074 = vpop.f32.mrf.mxu0
  %v1075 = vadd.f32 %v947, %v1074
  %v1076 = vpop.f32.mrf.mxu0
  %1077 = vmatprep.mubr.bf16.mxu0 0
  %1078 = vmatmul.mubr.bf16.gmra.mxu0 %v917
  %v1079 = vpop.f32.mrf.mxu0
  %v1080 = vadd.f32 %v947, %v1079
  %v1081 = vpop.f32.mrf.mxu0
  %v1082 = vpop.f32.mrf.mxu0
  %v1083 = vadd.f32 %v947, %v1082
  %v1084 = vpop.f32.mrf.mxu0
  %1085 = vmatprep.mubr.bf16.mxu0 0
  %1086 = vmatmul.mubr.bf16.gmra.mxu0 %v918
  %v1087 = vpop.f32.mrf.mxu0
  %v1088 = vadd.f32 %v947, %v1087
  %v1089 = vpop.f32.mrf.mxu0
  %v1090 = vpop.f32.mrf.mxu0
  %v1091 = vadd.f32 %v947, %v1090
  %v1092 = vpop.f32.mrf.mxu0
  %1093 = vmatprep.mubr.bf16.mxu0 0
  %1094 = vmatmul.mubr.bf16.gmra.mxu0 %v919
  %v1095 = vpop.f32.mrf.mxu0
  %v1096 = vadd.f32 %v947, %v1095
  %v1097 = vpop.f32.mrf.mxu0
  %v1098 = vpop.f32.mrf.mxu0
  %v1099 = vadd.f32 %v947, %v1098
  %v1100 = vpop.f32.mrf.mxu0
  %1101 = vmatprep.mubr.bf16.mxu0 0
  %1102 = vmatmul.mubr.bf16.gmra.mxu0 %v920
  %v1103 = vpop.f32.mrf.mxu0
  %v1104 = vadd.f32 %v947, %v1103
  %v1105 = vpop.f32.mrf.mxu0
  %v1106 = vpop.f32.mrf.mxu0
  %v1107 = vadd.f32 %v947, %v1106
  %v1108 = vpop.f32.mrf.mxu0
  %1109 = vmatprep.mubr.bf16.mxu0 0
  %1110 = vmatmul.mubr.bf16.gmra.mxu0 %v921
  %v1111 = vpop.f32.mrf.mxu0
  %v1112 = vadd.f32 %v947, %v1111
  %v1113 = vpop.f32.mrf.mxu0
  %v1114 = vpop.f32.mrf.mxu0
  %v1115 = vadd.f32 %v947, %v1114
  %v1116 = vpop.f32.mrf.mxu0
  %1117 = vmatprep.mubr.bf16.mxu0 0
  %1118 = vmatmul.mubr.bf16.gmra.mxu0 %v922
  %v1119 = vpop.f32.mrf.mxu0
  %v1120 = vadd.f32 %v947, %v1119
  %v1121 = vpop.f32.mrf.mxu0
  %v1122 = vpop.f32.mrf.mxu0
  %v1123 = vadd.f32 %v947, %v1122
  %v1124 = vpop.f32.mrf.mxu0
  %1125 = vmatprep.mubr.bf16.mxu0 0
  %1126 = vmatmul.mubr.bf16.gmra.mxu0 %v923
  %v1127 = vpop.f32.mrf.mxu0
  %v1128 = vadd.f32 %v947, %v1127
  %v1129 = vpop.f32.mrf.mxu0
  %v1130 = vpop.f32.mrf.mxu0
  %v1131 = vadd.f32 %v947, %v1130
  %v1132 = vpop.f32.mrf.mxu0
  %1133 = vmatprep.mubr.bf16.mxu0 0
  %1134 = vmatmul.mubr.bf16.gmra.mxu0 %v924
  %v1135 = vpop.f32.mrf.mxu0
  %v1136 = vadd.f32 %v947, %v1135
  %v1137 = vpop.f32.mrf.mxu0
  %v1138 = vpop.f32.mrf.mxu0
  %v1139 = vadd.f32 %v947, %v1138
  %v1140 = vpop.f32.mrf.mxu0
  %1141 = vmatprep.mubr.bf16.mxu0 0
  %1142 = vmatmul.mubr.bf16.gmra.mxu0 %v925
  %v1143 = vpop.f32.mrf.mxu0
  %v1144 = vadd.f32 %v947, %v1143
  %v1145 = vpop.f32.mrf.mxu0
  %v1146 = vpop.f32.mrf.mxu0
  %v1147 = vadd.f32 %v947, %v1146
  %v1148 = vpop.f32.mrf.mxu0
  %1149 = vmatprep.mubr.bf16.mxu0 0
  %1150 = vmatmul.mubr.bf16.gmra.mxu0 %v926
  %v1151 = vpop.f32.mrf.mxu0
  %v1152 = vadd.f32 %v947, %v1151
  %v1153 = vpop.f32.mrf.mxu0
  %v1154 = vpop.f32.mrf.mxu0
  %v1155 = vadd.f32 %v947, %v1154
  %v1156 = vpop.f32.mrf.mxu0
  %1157 = vdwg.mxu0
  %vm1158 = vcmask 64512
  %v1159 = vsel %vm1158, %v1032, -inf
  %1160 = vmax.xlane.f32.xlu0 %v1159
  %v1161 = vpop.xlane.xlu0 %1160
  %v1162 = vsel %vm1158, %v1035, -inf
  %1163 = vmax.xlane.f32.xlu0 %v1162
  %v1164 = vpop.xlane.xlu0 %1163
  %v1165 = vsel %vm1158, %v1040, -inf
  %1166 = vmax.xlane.f32.xlu0 %v1165
  %v1167 = vpop.xlane.xlu0 %1166
  %v1168 = vsel %vm1158, %v1043, -inf
  %1169 = vmax.xlane.f32.xlu0 %v1168
  %v1170 = vpop.xlane.xlu0 %1169
  %v1171 = vsel %vm1158, %v1048, -inf
  %1172 = vmax.xlane.f32.xlu0 %v1171
  %v1173 = vpop.xlane.xlu0 %1172
  %v1174 = vsel %vm1158, %v1051, -inf
  %1175 = vmax.xlane.f32.xlu0 %v1174
  %v1176 = vpop.xlane.xlu0 %1175
  %v1177 = vsel %vm1158, %v1056, -inf
  %1178 = vmax.xlane.f32.xlu0 %v1177
  %v1179 = vpop.xlane.xlu0 %1178
  %v1180 = vsel %vm1158, %v1059, -inf
  %1181 = vmax.xlane.f32.xlu0 %v1180
  %v1182 = vpop.xlane.xlu0 %1181
  %v1183 = vsel %vm1158, %v1064, -inf
  %1184 = vmax.xlane.f32.xlu0 %v1183
  %v1185 = vpop.xlane.xlu0 %1184
  %v1186 = vsel %vm1158, %v1067, -inf
  %1187 = vmax.xlane.f32.xlu0 %v1186
  %v1188 = vpop.xlane.xlu0 %1187
  %v1189 = vsel %vm1158, %v1072, -inf
  %1190 = vmax.xlane.f32.xlu0 %v1189
  %v1191 = vpop.xlane.xlu0 %1190
  %v1192 = vsel %vm1158, %v1075, -inf
  %1193 = vmax.xlane.f32.xlu0 %v1192
  %v1194 = vpop.xlane.xlu0 %1193
  %v1195 = vsel %vm1158, %v1080, -inf
  %1196 = vmax.xlane.f32.xlu0 %v1195
  %v1197 = vpop.xlane.xlu0 %1196
  %v1198 = vsel %vm1158, %v1083, -inf
  %1199 = vmax.xlane.f32.xlu0 %v1198
  %v1200 = vpop.xlane.xlu0 %1199
  %v1201 = vsel %vm1158, %v1088, -inf
  %1202 = vmax.xlane.f32.xlu0 %v1201
  %v1203 = vpop.xlane.xlu0 %1202
  %v1204 = vsel %vm1158, %v1091, -inf
  %1205 = vmax.xlane.f32.xlu0 %v1204
  %v1206 = vpop.xlane.xlu0 %1205
  %v1207 = vsel %vm1158, %v1096, -inf
  %1208 = vmax.xlane.f32.xlu0 %v1207
  %v1209 = vpop.xlane.xlu0 %1208
  %v1210 = vsel %vm1158, %v1099, -inf
  %1211 = vmax.xlane.f32.xlu0 %v1210
  %v1212 = vpop.xlane.xlu0 %1211
  %v1213 = vsel %vm1158, %v1104, -inf
  %1214 = vmax.xlane.f32.xlu0 %v1213
  %v1215 = vpop.xlane.xlu0 %1214
  %v1216 = vsel %vm1158, %v1107, -inf
  %1217 = vmax.xlane.f32.xlu0 %v1216
  %v1218 = vpop.xlane.xlu0 %1217
  %v1219 = vsel %vm1158, %v1112, -inf
  %1220 = vmax.xlane.f32.xlu0 %v1219
  %v1221 = vpop.xlane.xlu0 %1220
  %v1222 = vsel %vm1158, %v1115, -inf
  %1223 = vmax.xlane.f32.xlu0 %v1222
  %v1224 = vpop.xlane.xlu0 %1223
  %v1225 = vsel %vm1158, %v1120, -inf
  %1226 = vmax.xlane.f32.xlu0 %v1225
  %v1227 = vpop.xlane.xlu0 %1226
  %v1228 = vsel %vm1158, %v1123, -inf
  %1229 = vmax.xlane.f32.xlu0 %v1228
  %v1230 = vpop.xlane.xlu0 %1229
  %v1231 = vsel %vm1158, %v1128, -inf
  %1232 = vmax.xlane.f32.xlu0 %v1231
  %v1233 = vpop.xlane.xlu0 %1232
  %v1234 = vsel %vm1158, %v1131, -inf
  %1235 = vmax.xlane.f32.xlu0 %v1234
  %v1236 = vpop.xlane.xlu0 %1235
  %v1237 = vsel %vm1158, %v1136, -inf
  %1238 = vmax.xlane.f32.xlu0 %v1237
  %v1239 = vpop.xlane.xlu0 %1238
  %v1240 = vsel %vm1158, %v1139, -inf
  %1241 = vmax.xlane.f32.xlu0 %v1240
  %v1242 = vpop.xlane.xlu0 %1241
  %v1243 = vsel %vm1158, %v1144, -inf
  %1244 = vmax.xlane.f32.xlu0 %v1243
  %v1245 = vpop.xlane.xlu0 %1244
  %v1246 = vsel %vm1158, %v1147, -inf
  %1247 = vmax.xlane.f32.xlu0 %v1246
  %v1248 = vpop.xlane.xlu0 %1247
  %v1249 = vsel %vm1158, %v1152, -inf
  %1250 = vmax.xlane.f32.xlu0 %v1249
  %v1251 = vpop.xlane.xlu0 %1250
  %v1252 = vsel %vm1158, %v1155, -inf
  %1253 = vmax.xlane.f32.xlu0 %v1252
  %v1254 = vpop.xlane.xlu0 %1253
  %v1255 = vsub.f32 %v1032, %v1161
  %v1256 = vsub.f32 %v1035, %v1164
  %v1257 = vsub.f32 %v1040, %v1167
  %v1258 = vsub.f32 %v1043, %v1170
  %v1259 = vsub.f32 %v1048, %v1173
  %v1260 = vsub.f32 %v1051, %v1176
  %v1261 = vsub.f32 %v1056, %v1179
  %v1262 = vsub.f32 %v1059, %v1182
  %v1263 = vsub.f32 %v1064, %v1185
  %v1264 = vsub.f32 %v1067, %v1188
  %v1265 = vsub.f32 %v1072, %v1191
  %v1266 = vsub.f32 %v1075, %v1194
  %v1267 = vsub.f32 %v1080, %v1197
  %v1268 = vsub.f32 %v1083, %v1200
  %v1269 = vsub.f32 %v1088, %v1203
  %v1270 = vsub.f32 %v1091, %v1206
  %v1271 = vsub.f32 %v1096, %v1209
  %v1272 = vsub.f32 %v1099, %v1212
  %v1273 = vsub.f32 %v1104, %v1215
  %v1274 = vsub.f32 %v1107, %v1218
  %v1275 = vsub.f32 %v1112, %v1221
  %v1276 = vsub.f32 %v1115, %v1224
  %v1277 = vsub.f32 %v1120, %v1227
  %v1278 = vsub.f32 %v1123, %v1230
  %v1279 = vsub.f32 %v1128, %v1233
  %v1280 = vsub.f32 %v1131, %v1236
  %v1281 = vsub.f32 %v1136, %v1239
  %v1282 = vsub.f32 %v1139, %v1242
  %v1283 = vsub.f32 %v1144, %v1245
  %v1284 = vsub.f32 %v1147, %v1248
  %v1285 = vsub.f32 %v1152, %v1251
  %v1286 = vsub.f32 %v1155, %v1254
  %v1287 = vmul.f32 %v1255, 1.442695
  %v1288 = vpow.pop %v1287
  %v1289 = vmul.f32 %v1256, 1.442695
  %v1290 = vpow.pop %v1289
  %v1291 = vmul.f32 %v1257, 1.442695
  %v1292 = vpow.pop %v1291
  %v1293 = vmul.f32 %v1258, 1.442695
  %v1294 = vpow.pop %v1293
  %v1295 = vmul.f32 %v1259, 1.442695
  %v1296 = vpow.pop %v1295
  %v1297 = vmul.f32 %v1260, 1.442695
  %v1298 = vpow.pop %v1297
  %v1299 = vmul.f32 %v1261, 1.442695
  %v1300 = vpow.pop %v1299
  %v1301 = vmul.f32 %v1262, 1.442695
  %v1302 = vpow.pop %v1301
  %v1303 = vmul.f32 %v1263, 1.442695
  %v1304 = vpow.pop %v1303
  %v1305 = vmul.f32 %v1264, 1.442695
  %v1306 = vpow.pop %v1305
  %v1307 = vmul.f32 %v1265, 1.442695
  %v1308 = vpow.pop %v1307
  %v1309 = vmul.f32 %v1266, 1.442695
  %v1310 = vpow.pop %v1309
  %v1311 = vmul.f32 %v1267, 1.442695
  %v1312 = vpow.pop %v1311
  %v1313 = vmul.f32 %v1268, 1.442695
  %v1314 = vpow.pop %v1313
  %v1315 = vmul.f32 %v1269, 1.442695
  %v1316 = vpow.pop %v1315
  %v1317 = vmul.f32 %v1270, 1.442695
  %v1318 = vpow.pop %v1317
  %v1319 = vmul.f32 %v1271, 1.442695
  %v1320 = vpow.pop %v1319
  %v1321 = vmul.f32 %v1272, 1.442695
  %v1322 = vpow.pop %v1321
  %v1323 = vmul.f32 %v1273, 1.442695
  %v1324 = vpow.pop %v1323
  %v1325 = vmul.f32 %v1274, 1.442695
  %v1326 = vpow.pop %v1325
  %v1327 = vmul.f32 %v1275, 1.442695
  %v1328 = vpow.pop %v1327
  %v1329 = vmul.f32 %v1276, 1.442695
  %v1330 = vpow.pop %v1329
  %v1331 = vmul.f32 %v1277, 1.442695
  %v1332 = vpow.pop %v1331
  %v1333 = vmul.f32 %v1278, 1.442695
  %v1334 = vpow.pop %v1333
  %v1335 = vmul.f32 %v1279, 1.442695
  %v1336 = vpow.pop %v1335
  %v1337 = vmul.f32 %v1280, 1.442695
  %v1338 = vpow.pop %v1337
  %v1339 = vmul.f32 %v1281, 1.442695
  %v1340 = vpow.pop %v1339
  %v1341 = vmul.f32 %v1282, 1.442695
  %v1342 = vpow.pop %v1341
  %v1343 = vmul.f32 %v1283, 1.442695
  %v1344 = vpow.pop %v1343
  %v1345 = vmul.f32 %v1284, 1.442695
  %v1346 = vpow.pop %v1345
  %v1347 = vmul.f32 %v1285, 1.442695
  %v1348 = vpow.pop %v1347
  %v1349 = vmul.f32 %v1286, 1.442695
  %v1350 = vpow.pop %v1349
  %v1351 = vsel %vm1158, %v1288, 0.0
  %1352 = vadd.xlane.f32.xlu0 %v1351
  %v1353 = vpop.xlane.xlu0 %1352
  %v1354 = vsel %vm1158, %v1290, 0.0
  %1355 = vadd.xlane.f32.xlu0 %v1354
  %v1356 = vpop.xlane.xlu0 %1355
  %v1357 = vsel %vm1158, %v1292, 0.0
  %1358 = vadd.xlane.f32.xlu0 %v1357
  %v1359 = vpop.xlane.xlu0 %1358
  %v1360 = vsel %vm1158, %v1294, 0.0
  %1361 = vadd.xlane.f32.xlu0 %v1360
  %v1362 = vpop.xlane.xlu0 %1361
  %v1363 = vsel %vm1158, %v1296, 0.0
  %1364 = vadd.xlane.f32.xlu0 %v1363
  %v1365 = vpop.xlane.xlu0 %1364
  %v1366 = vsel %vm1158, %v1298, 0.0
  %1367 = vadd.xlane.f32.xlu0 %v1366
  %v1368 = vpop.xlane.xlu0 %1367
  %v1369 = vsel %vm1158, %v1300, 0.0
  %1370 = vadd.xlane.f32.xlu0 %v1369
  %v1371 = vpop.xlane.xlu0 %1370
  %v1372 = vsel %vm1158, %v1302, 0.0
  %1373 = vadd.xlane.f32.xlu0 %v1372
  %v1374 = vpop.xlane.xlu0 %1373
  %v1375 = vsel %vm1158, %v1304, 0.0
  %1376 = vadd.xlane.f32.xlu0 %v1375
  %v1377 = vpop.xlane.xlu0 %1376
  %v1378 = vsel %vm1158, %v1306, 0.0
  %1379 = vadd.xlane.f32.xlu0 %v1378
  %v1380 = vpop.xlane.xlu0 %1379
  %v1381 = vsel %vm1158, %v1308, 0.0
  %1382 = vadd.xlane.f32.xlu0 %v1381
  %v1383 = vpop.xlane.xlu0 %1382
  %v1384 = vsel %vm1158, %v1310, 0.0
  %1385 = vadd.xlane.f32.xlu0 %v1384
  %v1386 = vpop.xlane.xlu0 %1385
  %v1387 = vsel %vm1158, %v1312, 0.0
  %1388 = vadd.xlane.f32.xlu0 %v1387
  %v1389 = vpop.xlane.xlu0 %1388
  %v1390 = vsel %vm1158, %v1314, 0.0
  %1391 = vadd.xlane.f32.xlu0 %v1390
  %v1392 = vpop.xlane.xlu0 %1391
  %v1393 = vsel %vm1158, %v1316, 0.0
  %1394 = vadd.xlane.f32.xlu0 %v1393
  %v1395 = vpop.xlane.xlu0 %1394
  %v1396 = vsel %vm1158, %v1318, 0.0
  %1397 = vadd.xlane.f32.xlu0 %v1396
  %v1398 = vpop.xlane.xlu0 %1397
  %v1399 = vsel %vm1158, %v1320, 0.0
  %1400 = vadd.xlane.f32.xlu0 %v1399
  %v1401 = vpop.xlane.xlu0 %1400
  %v1402 = vsel %vm1158, %v1322, 0.0
  %1403 = vadd.xlane.f32.xlu0 %v1402
  %v1404 = vpop.xlane.xlu0 %1403
  %v1405 = vsel %vm1158, %v1324, 0.0
  %1406 = vadd.xlane.f32.xlu0 %v1405
  %v1407 = vpop.xlane.xlu0 %1406
  %v1408 = vsel %vm1158, %v1326, 0.0
  %1409 = vadd.xlane.f32.xlu0 %v1408
  %v1410 = vpop.xlane.xlu0 %1409
  %v1411 = vsel %vm1158, %v1328, 0.0
  %1412 = vadd.xlane.f32.xlu0 %v1411
  %v1413 = vpop.xlane.xlu0 %1412
  %v1414 = vsel %vm1158, %v1330, 0.0
  %1415 = vadd.xlane.f32.xlu0 %v1414
  %v1416 = vpop.xlane.xlu0 %1415
  %v1417 = vsel %vm1158, %v1332, 0.0
  %1418 = vadd.xlane.f32.xlu0 %v1417
  %v1419 = vpop.xlane.xlu0 %1418
  %v1420 = vsel %vm1158, %v1334, 0.0
  %1421 = vadd.xlane.f32.xlu0 %v1420
  %v1422 = vpop.xlane.xlu0 %1421
  %v1423 = vsel %vm1158, %v1336, 0.0
  %1424 = vadd.xlane.f32.xlu0 %v1423
  %v1425 = vpop.xlane.xlu0 %1424
  %v1426 = vsel %vm1158, %v1338, 0.0
  %1427 = vadd.xlane.f32.xlu0 %v1426
  %v1428 = vpop.xlane.xlu0 %1427
  %v1429 = vsel %vm1158, %v1340, 0.0
  %1430 = vadd.xlane.f32.xlu0 %v1429
  %v1431 = vpop.xlane.xlu0 %1430
  %v1432 = vsel %vm1158, %v1342, 0.0
  %1433 = vadd.xlane.f32.xlu0 %v1432
  %v1434 = vpop.xlane.xlu0 %1433
  %v1435 = vsel %vm1158, %v1344, 0.0
  %1436 = vadd.xlane.f32.xlu0 %v1435
  %v1437 = vpop.xlane.xlu0 %1436
  %v1438 = vsel %vm1158, %v1346, 0.0
  %1439 = vadd.xlane.f32.xlu0 %v1438
  %v1440 = vpop.xlane.xlu0 %1439
  %v1441 = vsel %vm1158, %v1348, 0.0
  %1442 = vadd.xlane.f32.xlu0 %v1441
  %v1443 = vpop.xlane.xlu0 %1442
  %v1444 = vsel %vm1158, %v1350, 0.0
  %1445 = vadd.xlane.f32.xlu0 %v1444
  %v1446 = vpop.xlane.xlu0 %1445
  %s1447 = sld [smem:[#allocation2]]
  %v1448 = vrcp.pop %v1353
  %v1449 = vrcp.pop %v1356
  %v1450 = vrcp.pop %v1359
  %v1451 = vrcp.pop %v1362
  %v1452 = vrcp.pop %v1365
  %v1453 = vrcp.pop %v1368
  %v1454 = vrcp.pop %v1371
  %v1455 = vrcp.pop %v1374
  %v1456 = vrcp.pop %v1377
  %v1457 = vrcp.pop %v1380
  %v1458 = vrcp.pop %v1383
  %v1459 = vrcp.pop %v1386
  %v1460 = vrcp.pop %v1389
  %v1461 = vrcp.pop %v1392
  %v1462 = vrcp.pop %v1395
  %v1463 = vrcp.pop %v1398
  %v1464 = vrcp.pop %v1401
  %v1465 = vrcp.pop %v1404
  %v1466 = vrcp.pop %v1407
  %v1467 = vrcp.pop %v1410
  %v1468 = vrcp.pop %v1413
  %v1469 = vrcp.pop %v1416
  %v1470 = vrcp.pop %v1419
  %v1471 = vrcp.pop %v1422
  %v1472 = vrcp.pop %v1425
  %v1473 = vrcp.pop %v1428
  %v1474 = vrcp.pop %v1431
  %v1475 = vrcp.pop %v1434
  %v1476 = vrcp.pop %v1437
  %v1477 = vrcp.pop %v1440
  %v1478 = vrcp.pop %v1443
  %v1479 = vrcp.pop %v1446
  %v1480 = vstv %s1447
  %v1481 = vmul.f32 %v1480, %v1448
  %v1482 = vmul.f32 %v1480, %v1449
  %v1483 = vmul.f32 %v1480, %v1450
  %v1484 = vmul.f32 %v1480, %v1451
  %v1485 = vmul.f32 %v1480, %v1452
  %v1486 = vmul.f32 %v1480, %v1453
  %v1487 = vmul.f32 %v1480, %v1454
  %v1488 = vmul.f32 %v1480, %v1455
  %v1489 = vmul.f32 %v1480, %v1456
  %v1490 = vmul.f32 %v1480, %v1457
  %v1491 = vmul.f32 %v1480, %v1458
  %v1492 = vmul.f32 %v1480, %v1459
  %v1493 = vmul.f32 %v1480, %v1460
  %v1494 = vmul.f32 %v1480, %v1461
  %v1495 = vmul.f32 %v1480, %v1462
  %v1496 = vmul.f32 %v1480, %v1463
  %v1497 = vmul.f32 %v1480, %v1464
  %v1498 = vmul.f32 %v1480, %v1465
  %v1499 = vmul.f32 %v1480, %v1466
  %v1500 = vmul.f32 %v1480, %v1467
  %v1501 = vmul.f32 %v1480, %v1468
  %v1502 = vmul.f32 %v1480, %v1469
  %v1503 = vmul.f32 %v1480, %v1470
  %v1504 = vmul.f32 %v1480, %v1471
  %v1505 = vmul.f32 %v1480, %v1472
  %v1506 = vmul.f32 %v1480, %v1473
  %v1507 = vmul.f32 %v1480, %v1474
  %v1508 = vmul.f32 %v1480, %v1475
  %v1509 = vmul.f32 %v1480, %v1476
  %v1510 = vmul.f32 %v1480, %v1477
  %v1511 = vmul.f32 %v1480, %v1478
  %v1512 = vmul.f32 %v1480, %v1479
  %v1513 = vmul.f32 %v1288, %v1481
  %v1514 = vmul.f32 %v1290, %v1482
  %v1515 = vmul.f32 %v1292, %v1483
  %v1516 = vmul.f32 %v1294, %v1484
  %v1517 = vmul.f32 %v1296, %v1485
  %v1518 = vmul.f32 %v1298, %v1486
  %v1519 = vmul.f32 %v1300, %v1487
  %v1520 = vmul.f32 %v1302, %v1488
  %v1521 = vmul.f32 %v1304, %v1489
  %v1522 = vmul.f32 %v1306, %v1490
  %v1523 = vmul.f32 %v1308, %v1491
  %v1524 = vmul.f32 %v1310, %v1492
  %v1525 = vmul.f32 %v1312, %v1493
  %v1526 = vmul.f32 %v1314, %v1494
  %v1527 = vmul.f32 %v1316, %v1495
  %v1528 = vmul.f32 %v1318, %v1496
  %v1529 = vmul.f32 %v1320, %v1497
  %v1530 = vmul.f32 %v1322, %v1498
  %v1531 = vmul.f32 %v1324, %v1499
  %v1532 = vmul.f32 %v1326, %v1500
  %v1533 = vmul.f32 %v1328, %v1501
  %v1534 = vmul.f32 %v1330, %v1502
  %v1535 = vmul.f32 %v1332, %v1503
  %v1536 = vmul.f32 %v1334, %v1504
  %v1537 = vmul.f32 %v1336, %v1505
  %v1538 = vmul.f32 %v1338, %v1506
  %v1539 = vmul.f32 %v1340, %v1507
  %v1540 = vmul.f32 %v1342, %v1508
  %v1541 = vmul.f32 %v1344, %v1509
  %v1542 = vmul.f32 %v1346, %v1510
  %v1543 = vmul.f32 %v1348, %v1511
  %v1544 = vmul.f32 %v1350, %v1512
  %1545 = vst.msk [vmem:[%s10] sm:$0xff] %vm1158, %v1513
  %1546 = vst.msk [vmem:[%s10 + $0x8] sm:$0xff] %vm1158, %v1514
  %1547 = vst.msk [vmem:[%s10 + $0x10] sm:$0xff] %vm1158, %v1515
  %1548 = vst.msk [vmem:[%s10 + $0x18] sm:$0xff] %vm1158, %v1516
  %1549 = vst.msk [vmem:[%s10 + $0x20] sm:$0xff] %vm1158, %v1517
  %1550 = vst.msk [vmem:[%s10 + $0x28] sm:$0xff] %vm1158, %v1518
  %1551 = vst.msk [vmem:[%s10 + $0x30] sm:$0xff] %vm1158, %v1519
  %1552 = vst.msk [vmem:[%s10 + $0x38] sm:$0xff] %vm1158, %v1520
  %1553 = vst.msk [vmem:[%s10 + $0x40] sm:$0xff] %vm1158, %v1521
  %1554 = vst.msk [vmem:[%s10 + $0x48] sm:$0xff] %vm1158, %v1522
  %1555 = vst.msk [vmem:[%s10 + $0x50] sm:$0xff] %vm1158, %v1523
  %1556 = vst.msk [vmem:[%s10 + $0x58] sm:$0xff] %vm1158, %v1524
  %1557 = vst.msk [vmem:[%s10 + $0x60] sm:$0xff] %vm1158, %v1525
  %1558 = vst.msk [vmem:[%s10 + $0x68] sm:$0xff] %vm1158, %v1526
  %1559 = vst.msk [vmem:[%s10 + $0x70] sm:$0xff] %vm1158, %v1527
  %1560 = vst.msk [vmem:[%s10 + $0x78] sm:$0xff] %vm1158, %v1528
  %1561 = vst.msk [vmem:[%s10 + $0x80] sm:$0xff] %vm1158, %v1529
  %1562 = vst.msk [vmem:[%s10 + $0x88] sm:$0xff] %vm1158, %v1530
  %1563 = vst.msk [vmem:[%s10 + $0x90] sm:$0xff] %vm1158, %v1531
  %1564 = vst.msk [vmem:[%s10 + $0x98] sm:$0xff] %vm1158, %v1532
  %1565 = vst.msk [vmem:[%s10 + $0xa0] sm:$0xff] %vm1158, %v1533
  %1566 = vst.msk [vmem:[%s10 + $0xa8] sm:$0xff] %vm1158, %v1534
  %1567 = vst.msk [vmem:[%s10 + $0xb0] sm:$0xff] %vm1158, %v1535
  %1568 = vst.msk [vmem:[%s10 + $0xb8] sm:$0xff] %vm1158, %v1536
  %1569 = vst.msk [vmem:[%s10 + $0xc0] sm:$0xff] %vm1158, %v1537
  %1570 = vst.msk [vmem:[%s10 + $0xc8] sm:$0xff] %vm1158, %v1538
  %1571 = vst.msk [vmem:[%s10 + $0xd0] sm:$0xff] %vm1158, %v1539
  %1572 = vst.msk [vmem:[%s10 + $0xd8] sm:$0xff] %vm1158, %v1540
  %1573 = vst.msk [vmem:[%s10 + $0xe0] sm:$0xff] %vm1158, %v1541
  %1574 = vst.msk [vmem:[%s10 + $0xe8] sm:$0xff] %vm1158, %v1542
  %1575 = vst.msk [vmem:[%s10 + $0xf0] sm:$0xff] %vm1158, %v1543
  %1576 = vst.msk [vmem:[%s10 + $0xf8] sm:$0xff] %vm1158, %v1544
  // Predicated region
  $region42: #{tpu_custom_call.1} parent=0 // pred_check
    _
  $region43: #{tpu_custom_call.1} parent=0 // pred_check_branch
    %1578 = sbr.rel (0) target = $region45
  $region44: #{tpu_custom_call.1} parent=0 // pred_region
    _
  $region45: #{tpu_custom_call.1} parent=0 // pred_fallthru
    _
  // Predicated region
  $region46: #{tpu_custom_call.1} parent=0 // pred_check
    _
  $region47: #{tpu_custom_call.1} parent=0 // pred_check_branch
    %1580 = sbr.rel (0) target = $region49
  $region48: #{tpu_custom_call.1} parent=0 // pred_region
    _
  $region49: #{tpu_custom_call.1} parent=0 // pred_fallthru
    _

</llo_original>
